<compile_context>
chip_gen: v6e
topology: v6e:2x2x1
jax: 0.10.0
libtpu: 0.0.40
codegen_flags: <defaults>
</compile_context>

<pallas_src>
import functools

import jax
import jax.numpy as jnp
from jax.experimental import pallas as pl
from jax.experimental.pallas import tpu as pltpu


NEG_FILL = -100000000000.0  # matches out[...].data.fill_(-1e11) in Base.forward


def _round_up(v, m):
    return ((v + m - 1) // m) * m


# ---------------------------------------------------------------------------
# Kernel: fused 3x3 conv (3 row-shifted block-Toeplitz matmuls) + bias + ReLU
# + global-average-pool + classifier + task mask, per batch tile.
# ---------------------------------------------------------------------------
def _base_forward_kernel(x_ref,      # (tb, H+2, (W+2)*C_in)  bf16  padded NHWC tile
                         wconv_ref,  # (3, (W+2)*C_in, W*Cm)  bf16  block-Toeplitz conv w
                         b1_ref,     # (1, W*Cm)              f32   conv bias tiled over W
                         whead_ref,  # (W*Cm, NCP)            bf16  (w2/HW) tiled, task-masked
                         b2_ref,     # (1, NCP)               f32   b2; NEG_FILL outside task
                         out_ref,    # (tb, NCP)              f32   masked logits tile
                         *, tb, h_img, w_img, c_in, c_mid, ncp, ch):
    wc = (w_img + 2) * c_in
    logits_acc = jnp.zeros((tb, ncp), jnp.float32)

    # Chunk conv + ReLU + pool over image rows: live pre-ReLU activation is
    # capped at (tb*ch, W*Cm) instead of (tb*H*W, Cm).
    for hc in range(h_img // ch):
        acc = jnp.zeros((tb * ch, w_img * c_mid), jnp.float32)
        for di in range(3):                       # the 3 row taps of the 3x3 conv
            rows = x_ref[:, hc * ch + di: hc * ch + di + ch, :]      # (tb, ch, wc)
            acc = acc + jnp.dot(rows.reshape(tb * ch, wc), wconv_ref[di],
                                preferred_element_type=jnp.float32)
        act = jnp.maximum(acc + b1_ref[...], 0.0)                    # bias + ReLU (f32)
        # pool (1/HW folded) + classifier fused into one lane-dense matmul;
        # remaining row reduction is a cheap 8-sublane-group sum.
        part = jnp.dot(act.astype(whead_ref.dtype), whead_ref[...],
                       preferred_element_type=jnp.float32)           # (tb*ch, NCP)
        logits_acc = logits_acc + jnp.sum(part.reshape(tb, ch, ncp), axis=1)

    # Task mask already folded into whead/b2: masked columns are exactly -1e11.
    out_ref[...] = (logits_acc + b2_ref[...]).astype(out_ref.dtype)


# ---------------------------------------------------------------------------
# Wrapper: weight/layout prep + pallas_call
# ---------------------------------------------------------------------------
@functools.partial(jax.jit, static_argnames=("task", "cpt", "n_tasks", "tb", "ch"))
def base_forward(x, params, *, task, cpt, n_tasks, tb=64, ch=8):
    """Equivalent of Base.forward(x, task)."""
    w1, b1, w2, b2 = params            # w1 (3,3,Cin,Cm) HWIO, b1 (Cm,), w2 (Cm,NC), b2 (NC,)
    B, c_in, H, W = x.shape
    kh, kw, _, c_mid = w1.shape
    assert (kh, kw) == (3, 3) and H % ch == 0
    n_classes = cpt * n_tasks
    ncp = _round_up(n_classes, 128)    # lane-dense logits pad
    wc = (W + 2) * c_in

    # Batch tile: multiple of 8; keep >=2 grid steps when the batch allows so
    # both v7x TensorCores get work (no cost on single-TC v5e/v6e).
    tb = _round_up(min(tb, _round_up(B, 8)), 8)
    if B > 8 and _round_up(B, 8) <= tb:
        tb = max(8, _round_up(tb // 2, 8))
    b_pad = _round_up(B, tb)

    # Input prep: bf16 cast BEFORE any expansion; batch+spatial pad on x itself
    # (1x image bytes).  Layout (B, H+2, (W+2)*C_in) lets the kernel do the
    # im2col with plain row-shifted slices.
    x_bf = jnp.transpose(x.astype(jnp.bfloat16), (0, 2, 3, 1))        # NHWC bf16
    x_bf = jnp.pad(x_bf, ((0, b_pad - B), (1, 1), (1, 1), (0, 0)))
    x_in = x_bf.reshape(b_pad, H + 2, wc)

    # Block-Toeplitz conv weight: tap di is applied to image rows h+di; the
    # w-shift + channel contraction are folded into the (wc -> W*Cm) matmul.
    djs = jnp.arange(3)[:, None, None]
    wps = jnp.arange(W + 2)[None, :, None]
    wos = jnp.arange(W)[None, None, :]
    shift = (wps == wos + djs).astype(w1.dtype)                       # (3, W+2, W)
    wconv = jnp.einsum('jpw,ijcm->ipcwm', shift, w1)                  # (3, W+2, C, W, Cm)
    wconv = wconv.reshape(3, wc, W * c_mid).astype(jnp.bfloat16)
    b1_t = jnp.tile(b1.reshape(1, c_mid), (1, W)).astype(jnp.float32)  # (1, W*Cm)

    # Fused pool + classifier weight: 1/HW and the task mask folded in; masked
    # columns get exactly NEG_FILL from the bias with zero weight contribution.
    lo = cpt * task
    hi = cpt * (task + 1)
    w2m = jnp.zeros((c_mid, ncp), jnp.float32).at[:, lo:hi].set(w2[:, lo:hi] / (H * W))
    whead = jnp.tile(w2m, (W, 1)).astype(jnp.bfloat16)                # (W*Cm, NCP)
    b2_p = jnp.full((1, ncp), NEG_FILL, jnp.float32).at[0, lo:hi].set(b2[lo:hi])

    kernel = functools.partial(_base_forward_kernel, tb=tb, h_img=H, w_img=W,
                               c_in=c_in, c_mid=c_mid, ncp=ncp, ch=ch)

    cost = pl.CostEstimate(
        flops=2 * b_pad * H * wc * (W * c_mid) * 3
              + 2 * b_pad * H * (W * c_mid) * ncp,
        transcendentals=0,
        bytes_accessed=(x_in.size * 2 + wconv.size * 2 + b1_t.size * 4
                        + whead.size * 2 + b2_p.size * 4 + b_pad * ncp * 4))

    out = pl.pallas_call(
        kernel,
        out_shape=jax.ShapeDtypeStruct((b_pad, ncp), jnp.float32),
        grid_spec=pl.GridSpec(
            grid=(b_pad // tb,),
            in_specs=[
                pl.BlockSpec((tb, H + 2, wc), lambda i: (i, 0, 0)),       # image tile
                pl.BlockSpec((3, wc, W * c_mid), lambda i: (0, 0, 0)),    # conv w (resident)
                pl.BlockSpec((1, W * c_mid), lambda i: (0, 0)),           # conv bias
                pl.BlockSpec((W * c_mid, ncp), lambda i: (0, 0)),         # head w (resident)
                pl.BlockSpec((1, ncp), lambda i: (0, 0)),                 # head bias
            ],
            out_specs=pl.BlockSpec((tb, ncp), lambda i: (i, 0)),          # lane-dense logits
        ),
        compiler_params=pltpu.CompilerParams(
            dimension_semantics=("parallel",),
            vmem_limit_bytes=48 * 1024 * 1024),
        cost_estimate=cost,
    )(x_in, wconv, b1_t, whead, b2_p)

    return out[:B, :n_classes]


def make_params(key, c_in, c_mid, n_classes, kh=3, kw=3):
    """Deterministic synthetic backbone parameters (HWIO conv weight)."""
    k1, k2, k3, k4 = jax.random.split(key, 4)
    fan_in = c_in * kh * kw
    w1 = jax.random.normal(k1, (kh, kw, c_in, c_mid), jnp.float32) * (1.0 / fan_in ** 0.5)
    b1 = jax.random.normal(k2, (c_mid,), jnp.float32) * 0.01
    w2 = jax.random.normal(k3, (c_mid, n_classes), jnp.float32) * (1.0 / c_mid ** 0.5)
    b2 = jax.random.normal(k4, (n_classes,), jnp.float32) * 0.01
    return (w1, b1, w2, b2)


def _reference_forward(x, params, *, task, cpt, n_tasks):
    """Pure-JAX f32 reference for correctness checking."""
    w1, b1, w2, b2 = params
    h = jax.lax.conv_general_dilated(
        x, w1, window_strides=(1, 1), padding='SAME',
        dimension_numbers=('NCHW', 'HWIO', 'NHWC'))
    h = jnp.maximum(h + b1.reshape(1, 1, 1, -1), 0.0)
    pooled = jnp.mean(h, axis=(1, 2))
    logits = pooled @ w2 + b2.reshape(1, -1)
    if task > 0:
        logits = logits.at[:, :cpt * task].set(NEG_FILL)
    if task < n_tasks - 1:
        logits = logits.at[:, cpt * (task + 1):].set(NEG_FILL)
    return logits


if __name__ == "__main__":
    # Small shapes consistent with the module: batch=2, C_in=4, 16x16 images,
    # n_tasks=3 tasks with 4 classes per task -> 12 logits.
    B, C_IN, H, W = 2, 4, 16, 16
    C_MID = 32
    N_TASKS, CPT = 3, 4
    TASK = 1

    key = jax.random.PRNGKey(0)
    kx, kp = jax.random.split(key)
    x = jax.random.normal(kx, (B, C_IN, H, W), dtype=jnp.float32)
    params = make_params(kp, C_IN, C_MID, CPT * N_TASKS)

    out = base_forward(x, params, task=TASK, cpt=CPT, n_tasks=N_TASKS)
    out = jax.block_until_ready(out)

    ref = _reference_forward(x, params, task=TASK, cpt=CPT, n_tasks=N_TASKS)
    assert out.shape == (B, CPT * N_TASKS)
    # bf16 MXU inputs with f32 accumulation -> relaxed tolerance vs f32 ref;
    # masked columns are exactly -1e11 in both.
    assert jnp.allclose(out, ref, atol=5e-2, rtol=5e-2), "mismatch vs reference"

    print("KERNEL_OK")
</pallas_src>

<mosaic_0001>
module attributes {stable_mosaic.version = 11 : i64} {
  func.func @_base_forward_kernel(%arg0: i32, %arg1: memref<8x18x72xbf16, #tpu.memory_space<vmem>>, %arg2: memref<3x72x512xbf16, #tpu.memory_space<vmem>>, %arg3: memref<1x512xf32, #tpu.memory_space<vmem>>, %arg4: memref<512x128xbf16, #tpu.memory_space<vmem>>, %arg5: memref<1x128xf32, #tpu.memory_space<vmem>>, %arg6: memref<8x128xf32, #tpu.memory_space<vmem>>) attributes {dimension_semantics = [#tpu.dimension_semantics<parallel>], iteration_bounds = array<i64: 1>, scalar_prefetch = 0 : i64, scratch_operands = 0 : i64, tpu.core_type = #tpu.core_type<tc>, window_params = [{transform_indices = @transform_0, window_bounds = array<i64: 8, 18, 72>}, {pipeline_mode = #tpu.pipeline_mode<synchronous>, transform_indices = @transform_1, window_bounds = array<i64: 3, 72, 512>}, {pipeline_mode = #tpu.pipeline_mode<synchronous>, transform_indices = @transform_2, window_bounds = array<i64: 1, 512>}, {pipeline_mode = #tpu.pipeline_mode<synchronous>, transform_indices = @transform_3, window_bounds = array<i64: 512, 128>}, {pipeline_mode = #tpu.pipeline_mode<synchronous>, transform_indices = @transform_4, window_bounds = array<i64: 1, 128>}, {transform_indices = @transform_5, window_bounds = array<i64: 8, 128>}]} {
    %cst = arith.constant 0.000000e+00 : f32
    %0 = vector.broadcast %cst : f32 to vector<8x128xf32>
    %cst_0 = arith.constant 0.000000e+00 : f32
    %1 = vector.broadcast %cst_0 : f32 to vector<64x512xf32>
    %c0 = arith.constant 0 : index
    %c0_1 = arith.constant 0 : index
    %c0_2 = arith.constant 0 : index
    %2 = vector.load %arg1[%c0, %c0_1, %c0_2] : memref<8x18x72xbf16, #tpu.memory_space<vmem>>, vector<8x8x72xbf16>
    %3 = vector.shape_cast %2 : vector<8x8x72xbf16> to vector<64x72xbf16>
    %c0_3 = arith.constant 0 : index
    %c0_4 = arith.constant 0 : index
    %c0_5 = arith.constant 0 : index
    %4 = vector.load %arg2[%c0_3, %c0_4, %c0_5] : memref<3x72x512xbf16, #tpu.memory_space<vmem>>, vector<1x72x512xbf16>
    %5 = vector.shape_cast %4 : vector<1x72x512xbf16> to vector<72x512xbf16>
    %cst_6 = arith.constant dense<0.000000e+00> : vector<64x512xf32>
    %6 = tpu.matmul %3, %5, %cst_6 {dimension_numbers = #tpu.dot_dimension_numbers<[1], [0], [0], [1], [0, 0, 1, 1], [], []>} : vector<64x72xbf16>, vector<72x512xbf16>, vector<64x512xf32> -> vector<64x512xf32>
    %7 = arith.addf %1, %6 : vector<64x512xf32>
    %c0_7 = arith.constant 0 : index
    %c1 = arith.constant 1 : index
    %c0_8 = arith.constant 0 : index
    %8 = vector.load %arg1[%c0_7, %c1, %c0_8] : memref<8x18x72xbf16, #tpu.memory_space<vmem>>, vector<8x8x72xbf16>
    %9 = vector.shape_cast %8 : vector<8x8x72xbf16> to vector<64x72xbf16>
    %c1_9 = arith.constant 1 : index
    %c0_10 = arith.constant 0 : index
    %c0_11 = arith.constant 0 : index
    %10 = vector.load %arg2[%c1_9, %c0_10, %c0_11] : memref<3x72x512xbf16, #tpu.memory_space<vmem>>, vector<1x72x512xbf16>
    %11 = vector.shape_cast %10 : vector<1x72x512xbf16> to vector<72x512xbf16>
    %cst_12 = arith.constant dense<0.000000e+00> : vector<64x512xf32>
    %12 = tpu.matmul %9, %11, %cst_12 {dimension_numbers = #tpu.dot_dimension_numbers<[1], [0], [0], [1], [0, 0, 1, 1], [], []>} : vector<64x72xbf16>, vector<72x512xbf16>, vector<64x512xf32> -> vector<64x512xf32>
    %13 = arith.addf %7, %12 : vector<64x512xf32>
    %c0_13 = arith.constant 0 : index
    %c2 = arith.constant 2 : index
    %c0_14 = arith.constant 0 : index
    %14 = vector.load %arg1[%c0_13, %c2, %c0_14] : memref<8x18x72xbf16, #tpu.memory_space<vmem>>, vector<8x8x72xbf16>
    %15 = vector.shape_cast %14 : vector<8x8x72xbf16> to vector<64x72xbf16>
    %c2_15 = arith.constant 2 : index
    %c0_16 = arith.constant 0 : index
    %c0_17 = arith.constant 0 : index
    %16 = vector.load %arg2[%c2_15, %c0_16, %c0_17] : memref<3x72x512xbf16, #tpu.memory_space<vmem>>, vector<1x72x512xbf16>
    %17 = vector.shape_cast %16 : vector<1x72x512xbf16> to vector<72x512xbf16>
    %cst_18 = arith.constant dense<0.000000e+00> : vector<64x512xf32>
    %18 = tpu.matmul %15, %17, %cst_18 {dimension_numbers = #tpu.dot_dimension_numbers<[1], [0], [0], [1], [0, 0, 1, 1], [], []>} : vector<64x72xbf16>, vector<72x512xbf16>, vector<64x512xf32> -> vector<64x512xf32>
    %19 = arith.addf %13, %18 : vector<64x512xf32>
    %c0_19 = arith.constant 0 : index
    %c0_20 = arith.constant 0 : index
    %20 = vector.load %arg3[%c0_19, %c0_20] : memref<1x512xf32, #tpu.memory_space<vmem>>, vector<1x512xf32>
    %21 = vector.broadcast %20 : vector<1x512xf32> to vector<64x512xf32>
    %22 = arith.addf %19, %21 : vector<64x512xf32>
    %cst_21 = arith.constant 0.000000e+00 : f32
    %23 = vector.broadcast %cst_21 : f32 to vector<64x512xf32>
    %24 = arith.maximumf %22, %23 : vector<64x512xf32>
    %25 = arith.truncf %24 : vector<64x512xf32> to vector<64x512xbf16>
    %c0_22 = arith.constant 0 : index
    %c0_23 = arith.constant 0 : index
    %26 = vector.load %arg4[%c0_22, %c0_23] : memref<512x128xbf16, #tpu.memory_space<vmem>>, vector<512x128xbf16>
    %cst_24 = arith.constant dense<0.000000e+00> : vector<64x128xf32>
    %27 = tpu.matmul %25, %26, %cst_24 {dimension_numbers = #tpu.dot_dimension_numbers<[1], [0], [0], [1], [0, 0, 1, 1], [], []>} : vector<64x512xbf16>, vector<512x128xbf16>, vector<64x128xf32> -> vector<64x128xf32>
    %28 = vector.shape_cast %27 : vector<64x128xf32> to vector<8x8x128xf32>
    %cst_25 = arith.constant dense<0.000000e+00> : vector<8x128xf32>
    %29 = vector.multi_reduction <add>, %28, %cst_25 [1] : vector<8x8x128xf32> to vector<8x128xf32>
    %30 = arith.addf %0, %29 : vector<8x128xf32>
    %cst_26 = arith.constant 0.000000e+00 : f32
    %31 = vector.broadcast %cst_26 : f32 to vector<64x512xf32>
    %c0_27 = arith.constant 0 : index
    %c8 = arith.constant 8 : index
    %c0_28 = arith.constant 0 : index
    %32 = vector.load %arg1[%c0_27, %c8, %c0_28] : memref<8x18x72xbf16, #tpu.memory_space<vmem>>, vector<8x8x72xbf16>
    %33 = vector.shape_cast %32 : vector<8x8x72xbf16> to vector<64x72xbf16>
    %c0_29 = arith.constant 0 : index
    %c0_30 = arith.constant 0 : index
    %c0_31 = arith.constant 0 : index
    %34 = vector.load %arg2[%c0_29, %c0_30, %c0_31] : memref<3x72x512xbf16, #tpu.memory_space<vmem>>, vector<1x72x512xbf16>
    %35 = vector.shape_cast %34 : vector<1x72x512xbf16> to vector<72x512xbf16>
    %cst_32 = arith.constant dense<0.000000e+00> : vector<64x512xf32>
    %36 = tpu.matmul %33, %35, %cst_32 {dimension_numbers = #tpu.dot_dimension_numbers<[1], [0], [0], [1], [0, 0, 1, 1], [], []>} : vector<64x72xbf16>, vector<72x512xbf16>, vector<64x512xf32> -> vector<64x512xf32>
    %37 = arith.addf %31, %36 : vector<64x512xf32>
    %c0_33 = arith.constant 0 : index
    %c9 = arith.constant 9 : index
    %c0_34 = arith.constant 0 : index
    %38 = vector.load %arg1[%c0_33, %c9, %c0_34] : memref<8x18x72xbf16, #tpu.memory_space<vmem>>, vector<8x8x72xbf16>
    %39 = vector.shape_cast %38 : vector<8x8x72xbf16> to vector<64x72xbf16>
    %c1_35 = arith.constant 1 : index
    %c0_36 = arith.constant 0 : index
    %c0_37 = arith.constant 0 : index
    %40 = vector.load %arg2[%c1_35, %c0_36, %c0_37] : memref<3x72x512xbf16, #tpu.memory_space<vmem>>, vector<1x72x512xbf16>
    %41 = vector.shape_cast %40 : vector<1x72x512xbf16> to vector<72x512xbf16>
    %cst_38 = arith.constant dense<0.000000e+00> : vector<64x512xf32>
    %42 = tpu.matmul %39, %41, %cst_38 {dimension_numbers = #tpu.dot_dimension_numbers<[1], [0], [0], [1], [0, 0, 1, 1], [], []>} : vector<64x72xbf16>, vector<72x512xbf16>, vector<64x512xf32> -> vector<64x512xf32>
    %43 = arith.addf %37, %42 : vector<64x512xf32>
    %c0_39 = arith.constant 0 : index
    %c10 = arith.constant 10 : index
    %c0_40 = arith.constant 0 : index
    %44 = vector.load %arg1[%c0_39, %c10, %c0_40] : memref<8x18x72xbf16, #tpu.memory_space<vmem>>, vector<8x8x72xbf16>
    %45 = vector.shape_cast %44 : vector<8x8x72xbf16> to vector<64x72xbf16>
    %c2_41 = arith.constant 2 : index
    %c0_42 = arith.constant 0 : index
    %c0_43 = arith.constant 0 : index
    %46 = vector.load %arg2[%c2_41, %c0_42, %c0_43] : memref<3x72x512xbf16, #tpu.memory_space<vmem>>, vector<1x72x512xbf16>
    %47 = vector.shape_cast %46 : vector<1x72x512xbf16> to vector<72x512xbf16>
    %cst_44 = arith.constant dense<0.000000e+00> : vector<64x512xf32>
    %48 = tpu.matmul %45, %47, %cst_44 {dimension_numbers = #tpu.dot_dimension_numbers<[1], [0], [0], [1], [0, 0, 1, 1], [], []>} : vector<64x72xbf16>, vector<72x512xbf16>, vector<64x512xf32> -> vector<64x512xf32>
    %49 = arith.addf %43, %48 : vector<64x512xf32>
    %c0_45 = arith.constant 0 : index
    %c0_46 = arith.constant 0 : index
    %50 = vector.load %arg3[%c0_45, %c0_46] : memref<1x512xf32, #tpu.memory_space<vmem>>, vector<1x512xf32>
    %51 = vector.broadcast %50 : vector<1x512xf32> to vector<64x512xf32>
    %52 = arith.addf %49, %51 : vector<64x512xf32>
    %cst_47 = arith.constant 0.000000e+00 : f32
    %53 = vector.broadcast %cst_47 : f32 to vector<64x512xf32>
    %54 = arith.maximumf %52, %53 : vector<64x512xf32>
    %55 = arith.truncf %54 : vector<64x512xf32> to vector<64x512xbf16>
    %c0_48 = arith.constant 0 : index
    %c0_49 = arith.constant 0 : index
    %56 = vector.load %arg4[%c0_48, %c0_49] : memref<512x128xbf16, #tpu.memory_space<vmem>>, vector<512x128xbf16>
    %cst_50 = arith.constant dense<0.000000e+00> : vector<64x128xf32>
    %57 = tpu.matmul %55, %56, %cst_50 {dimension_numbers = #tpu.dot_dimension_numbers<[1], [0], [0], [1], [0, 0, 1, 1], [], []>} : vector<64x512xbf16>, vector<512x128xbf16>, vector<64x128xf32> -> vector<64x128xf32>
    %58 = vector.shape_cast %57 : vector<64x128xf32> to vector<8x8x128xf32>
    %cst_51 = arith.constant dense<0.000000e+00> : vector<8x128xf32>
    %59 = vector.multi_reduction <add>, %58, %cst_51 [1] : vector<8x8x128xf32> to vector<8x128xf32>
    %60 = arith.addf %30, %59 : vector<8x128xf32>
    %c0_52 = arith.constant 0 : index
    %c0_53 = arith.constant 0 : index
    %61 = vector.load %arg5[%c0_52, %c0_53] : memref<1x128xf32, #tpu.memory_space<vmem>>, vector<1x128xf32>
    %62 = vector.broadcast %61 : vector<1x128xf32> to vector<8x128xf32>
    %63 = arith.addf %60, %62 : vector<8x128xf32>
    %c0_54 = arith.constant 0 : index
    %c0_55 = arith.constant 0 : index
    %64 = vector.load %arg6[%c0_54, %c0_55] : memref<8x128xf32, #tpu.memory_space<vmem>>, vector<8x128xf32>
    tpu.vector_store %arg6[%c0_54, %c0_55], %63 {strides = array<i32>} : memref<8x128xf32, #tpu.memory_space<vmem>>, vector<8x128xf32>,
    return
  }
  func.func @transform_0(%arg0: i32) -> (i32, i32, i32) {
    %c0_i32 = arith.constant 0 : i32
    %c0_i32_0 = arith.constant 0 : i32
    %c0_i32_1 = arith.constant 0 : i32
    return %arg0, %c0_i32, %c0_i32_0 : i32, i32, i32
  }
  func.func @transform_1(%arg0: i32) -> (i32, i32, i32) {
    %c0_i32 = arith.constant 0 : i32
    %c0_i32_0 = arith.constant 0 : i32
    %c0_i32_1 = arith.constant 0 : i32
    %c0_i32_2 = arith.constant 0 : i32
    return %c0_i32, %c0_i32_0, %c0_i32_1 : i32, i32, i32
  }
  func.func @transform_2(%arg0: i32) -> (i32, i32) {
    %c0_i32 = arith.constant 0 : i32
    %c0_i32_0 = arith.constant 0 : i32
    %c0_i32_1 = arith.constant 0 : i32
    return %c0_i32, %c0_i32_0 : i32, i32
  }
  func.func @transform_3(%arg0: i32) -> (i32, i32) {
    %c0_i32 = arith.constant 0 : i32
    %c0_i32_0 = arith.constant 0 : i32
    %c0_i32_1 = arith.constant 0 : i32
    return %c0_i32, %c0_i32_0 : i32, i32
  }
  func.func @transform_4(%arg0: i32) -> (i32, i32) {
    %c0_i32 = arith.constant 0 : i32
    %c0_i32_0 = arith.constant 0 : i32
    %c0_i32_1 = arith.constant 0 : i32
    return %c0_i32, %c0_i32_0 : i32, i32
  }
  func.func @transform_5(%arg0: i32) -> (i32, i32) {
    %c0_i32 = arith.constant 0 : i32
    %c0_i32_0 = arith.constant 0 : i32
    return %arg0, %c0_i32 : i32, i32
  }
}

</mosaic_0001>

<llo_original>
// kernel: base_forward.1
$region0: #{base_forward.1}
  #allocation0 [shape = 'u32[]', space=smem, size = 0x4, offset = 0x4, fixed_abs, tag = 'smem constant byte address 0x4 - core index']
  #allocation1 [shape = 'u32[144,128]{1,0:T(1,128)}', space=vmem, size = 0x12000, scoped, tag = 'internal scratch']
  %s0 = inlined_call_operand.vmem [shape: bf16[8,18,72], index: 0, kind: input, shape index: {}]
  %s1 = inlined_call_operand.vmem [shape: bf16[3,72,512], index: 1, kind: input, shape index: {}]
  %s2 = inlined_call_operand.vmem [shape: f32[1,512], index: 2, kind: input, shape index: {}]
  %s3 = inlined_call_operand.vmem [shape: bf16[512,128], index: 3, kind: input, shape index: {}]
  %s4 = inlined_call_operand.vmem [shape: f32[1,128], index: 4, kind: input, shape index: {}]
  %s5 = inlined_call_operand.vmem [shape: f32[8,128], index: 5, kind: output, shape index: {}]
  %s6 = sld [smem:[#allocation0]]
  $region30: #{base_forward.1} parent=0
    _
  %s8 = ssub.s32 1, %s6
  %s9 = scalar_select 0, %s8, %s6
  // Predicated region
  $region2: #{base_forward.1} parent=0 // pred_check
    _
  $region3: #{base_forward.1} parent=0 // pred_check_branch
    %11 = sbr.rel (0) target = $region5
  $region4: #{base_forward.1} parent=0 // pred_region
    _
  $region5: #{base_forward.1} parent=0 // pred_fallthru
    _
  // Predicated region
  $region6: #{base_forward.1} parent=0 // pred_check
    _
  $region7: #{base_forward.1} parent=0 // pred_check_branch
    %13 = sbr.rel (0) target = $region9
  $region8: #{base_forward.1} parent=0 // pred_region
    _
  $region9: #{base_forward.1} parent=0 // pred_fallthru
    _
  // Predicated region
  $region10: #{base_forward.1} parent=0 // pred_check
    _
  $region11: #{base_forward.1} parent=0 // pred_check_branch
    %15 = sbr.rel (0) target = $region13
  $region12: #{base_forward.1} parent=0 // pred_region
    _
  $region13: #{base_forward.1} parent=0 // pred_fallthru
    _
  // Predicated region
  $region14: #{base_forward.1} parent=0 // pred_check
    _
  $region15: #{base_forward.1} parent=0 // pred_check_branch
    %17 = sbr.rel (0) target = $region17
  $region16: #{base_forward.1} parent=0 // pred_region
    _
  $region17: #{base_forward.1} parent=0 // pred_fallthru
    _
  // Predicated region
  $region18: #{base_forward.1} parent=0 // pred_check
    _
  $region19: #{base_forward.1} parent=0 // pred_check_branch
    %19 = sbr.rel (0) target = $region21
  $region20: #{base_forward.1} parent=0 // pred_region
    _
  $region21: #{base_forward.1} parent=0 // pred_fallthru
    _
  %v21 = vld [vmem:[%s0] sm:$0xf]
  %v22 = vld [vmem:[%s0 + $0xc] sm:$0xf]
  %v23 = vld [vmem:[%s0 + $0x18] sm:$0xf]
  %v24 = vld [vmem:[%s0 + $0x24] sm:$0xf]
  %v25 = vld [vmem:[%s0 + $0x30] sm:$0xf]
  %v26 = vld [vmem:[%s0 + $0x3c] sm:$0xf]
  %v27 = vld [vmem:[%s0 + $0x48] sm:$0xf]
  %v28 = vld [vmem:[%s0 + $0x54] sm:$0xf]
  %v29 = vld [vmem:[%s1] sm:$0xff]
  %v30 = vld [vmem:[%s1 + $0x8] sm:$0xff]
  %v31 = vld [vmem:[%s1 + $0x10] sm:$0xff]
  %v32 = vld [vmem:[%s1 + $0x18] sm:$0xff]
  %v33 = vld [vmem:[%s1 + $0x20] sm:$0xff]
  %v34 = vld [vmem:[%s1 + $0x28] sm:$0xff]
  %v35 = vld [vmem:[%s1 + $0x30] sm:$0xff]
  %v36 = vld [vmem:[%s1 + $0x38] sm:$0xff]
  %v37 = vld [vmem:[%s1 + $0x40] sm:$0xff]
  %v38 = vld [vmem:[%s1 + $0x48] sm:$0xff]
  %v39 = vld [vmem:[%s1 + $0x50] sm:$0xff]
  %v40 = vld [vmem:[%s1 + $0x58] sm:$0xff]
  %v41 = vld [vmem:[%s1 + $0x60] sm:$0xff]
  %v42 = vld [vmem:[%s1 + $0x68] sm:$0xff]
  %v43 = vld [vmem:[%s1 + $0x70] sm:$0xff]
  %v44 = vld [vmem:[%s1 + $0x78] sm:$0xff]
  %v45 = vld [vmem:[%s1 + $0x80] sm:$0xff]
  %v46 = vld [vmem:[%s1 + $0x88] sm:$0xff]
  %v47 = vld [vmem:[%s0 + $0x4] sm:$0x1]
  %v48 = vld [vmem:[%s0 + $0x10] sm:$0x1]
  %v49 = vld [vmem:[%s0 + $0x1c] sm:$0x1]
  %v50 = vld [vmem:[%s0 + $0x28] sm:$0x1]
  %v51 = vld [vmem:[%s0 + $0x34] sm:$0x1]
  %v52 = vld [vmem:[%s0 + $0x40] sm:$0x1]
  %v53 = vld [vmem:[%s0 + $0x4c] sm:$0x1]
  %v54 = vld [vmem:[%s0 + $0x58] sm:$0x1]
  %vm55 = vsmask.f32 3328
  %vm56 = vsmask.f32 7440
  %vm57 = vmor %vm55, %vm56
  %v59 = vshrl.u32 %v21, 16
  %v61 = vrot.slane %v59, 4
  %v62 = vshll.u32 %v21, 16
  %v64 = vrot.slane %v62, 5
  %v65 = vor.u32 %v61, %v64
  %v66 = vrot.slane %v65, 4
  %v68 = vshll.u32 %v47, 16
  %v70 = vrot.slane %v68, 5
  %v71 = vsel %vm57, %v66, %v70
  %v73 = vshrl.u32 %v22, 16
  %v75 = vrot.slane %v73, 4
  %v76 = vshll.u32 %v22, 16
  %v78 = vrot.slane %v76, 5
  %v79 = vor.u32 %v75, %v78
  %v80 = vrot.slane %v79, 4
  %v82 = vshll.u32 %v48, 16
  %v84 = vrot.slane %v82, 5
  %v85 = vsel %vm57, %v80, %v84
  %v87 = vshrl.u32 %v23, 16
  %v89 = vrot.slane %v87, 4
  %v90 = vshll.u32 %v23, 16
  %v92 = vrot.slane %v90, 5
  %v93 = vor.u32 %v89, %v92
  %v94 = vrot.slane %v93, 4
  %v96 = vshll.u32 %v49, 16
  %v98 = vrot.slane %v96, 5
  %v99 = vsel %vm57, %v94, %v98
  %v101 = vshrl.u32 %v24, 16
  %v103 = vrot.slane %v101, 4
  %v104 = vshll.u32 %v24, 16
  %v106 = vrot.slane %v104, 5
  %v107 = vor.u32 %v103, %v106
  %v108 = vrot.slane %v107, 4
  %v110 = vshll.u32 %v50, 16
  %v112 = vrot.slane %v110, 5
  %v113 = vsel %vm57, %v108, %v112
  %v115 = vshrl.u32 %v25, 16
  %v117 = vrot.slane %v115, 4
  %v118 = vshll.u32 %v25, 16
  %v120 = vrot.slane %v118, 5
  %v121 = vor.u32 %v117, %v120
  %v122 = vrot.slane %v121, 4
  %v124 = vshll.u32 %v51, 16
  %v126 = vrot.slane %v124, 5
  %v127 = vsel %vm57, %v122, %v126
  %v129 = vshrl.u32 %v26, 16
  %v131 = vrot.slane %v129, 4
  %v132 = vshll.u32 %v26, 16
  %v134 = vrot.slane %v132, 5
  %v135 = vor.u32 %v131, %v134
  %v136 = vrot.slane %v135, 4
  %v138 = vshll.u32 %v52, 16
  %v140 = vrot.slane %v138, 5
  %v141 = vsel %vm57, %v136, %v140
  %v143 = vshrl.u32 %v27, 16
  %v145 = vrot.slane %v143, 4
  %v146 = vshll.u32 %v27, 16
  %v148 = vrot.slane %v146, 5
  %v149 = vor.u32 %v145, %v148
  %v150 = vrot.slane %v149, 4
  %v152 = vshll.u32 %v53, 16
  %v154 = vrot.slane %v152, 5
  %v155 = vsel %vm57, %v150, %v154
  %v157 = vshrl.u32 %v28, 16
  %v159 = vrot.slane %v157, 4
  %v160 = vshll.u32 %v28, 16
  %v162 = vrot.slane %v160, 5
  %v163 = vor.u32 %v159, %v162
  %v164 = vrot.slane %v163, 4
  %v166 = vshll.u32 %v54, 16
  %v168 = vrot.slane %v166, 5
  %v169 = vsel %vm57, %v164, %v168
  %s170 = scalar_lea.vmem %s1, 144
  %v171 = vld [vmem:[%s170] sm:$0xff]
  %v172 = vld [vmem:[%s170 + $0x8] sm:$0xff]
  %v173 = vld [vmem:[%s170 + $0x10] sm:$0xff]
  %v174 = vld [vmem:[%s170 + $0x18] sm:$0xff]
  %v175 = vld [vmem:[%s170 + $0x20] sm:$0xff]
  %v176 = vld [vmem:[%s170 + $0x28] sm:$0xff]
  %v177 = vld [vmem:[%s170 + $0x30] sm:$0xff]
  %v178 = vld [vmem:[%s170 + $0x38] sm:$0xff]
  %v179 = vld [vmem:[%s170 + $0x40] sm:$0xff]
  %v180 = vld [vmem:[%s170 + $0x48] sm:$0xff]
  %v181 = vld [vmem:[%s170 + $0x50] sm:$0xff]
  %v182 = vld [vmem:[%s170 + $0x58] sm:$0xff]
  %v183 = vld [vmem:[%s170 + $0x60] sm:$0xff]
  %v184 = vld [vmem:[%s170 + $0x68] sm:$0xff]
  %v185 = vld [vmem:[%s170 + $0x70] sm:$0xff]
  %v186 = vld [vmem:[%s170 + $0x78] sm:$0xff]
  %v187 = vld [vmem:[%s170 + $0x80] sm:$0xff]
  %v188 = vld [vmem:[%s170 + $0x88] sm:$0xff]
  %v189 = vunpack.c.l.b16 %v71
  %v190 = vunpack.c.l.b16 %v85
  %v191 = vunpack.c.l.b16 %v99
  %v192 = vunpack.c.l.b16 %v113
  %v193 = vunpack.c.l.b16 %v127
  %v194 = vunpack.c.l.b16 %v141
  %v195 = vunpack.c.l.b16 %v155
  %v196 = vunpack.c.l.b16 %v169
  %v197 = vpack.c.b16 %v190, %v189
  %v198 = vpack.c.b16 %v192, %v191
  %v199 = vpack.c.b16 %v194, %v193
  %v200 = vpack.c.b16 %v196, %v195
  %v219 = vunpack.c.l.b16 %v171
  %v220 = vunpack.c.h.b16 %v171
  %v221 = vunpack.c.l.b16 %v172
  %v222 = vunpack.c.h.b16 %v172
  %v223 = vunpack.c.l.b16 %v173
  %v224 = vunpack.c.h.b16 %v173
  %v225 = vunpack.c.l.b16 %v174
  %v226 = vunpack.c.h.b16 %v174
  %v227 = vunpack.c.l.b16 %v175
  %v228 = vunpack.c.h.b16 %v175
  %v229 = vunpack.c.l.b16 %v176
  %v230 = vunpack.c.h.b16 %v176
  %v231 = vunpack.c.l.b16 %v177
  %v232 = vunpack.c.h.b16 %v177
  %v233 = vunpack.c.l.b16 %v178
  %v234 = vunpack.c.h.b16 %v178
  %v235 = vunpack.c.l.b16 %v179
  %v236 = vunpack.c.h.b16 %v179
  %v237 = vunpack.c.l.b16 %v180
  %v238 = vunpack.c.h.b16 %v180
  %v239 = vunpack.c.l.b16 %v181
  %v240 = vunpack.c.h.b16 %v181
  %v241 = vunpack.c.l.b16 %v182
  %v242 = vunpack.c.h.b16 %v182
  %v243 = vunpack.c.l.b16 %v183
  %v244 = vunpack.c.h.b16 %v183
  %v245 = vunpack.c.l.b16 %v184
  %v246 = vunpack.c.h.b16 %v184
  %v247 = vunpack.c.l.b16 %v185
  %v248 = vunpack.c.h.b16 %v185
  %v249 = vunpack.c.l.b16 %v186
  %v250 = vunpack.c.h.b16 %v186
  %v251 = vunpack.c.l.b16 %v187
  %v252 = vunpack.c.h.b16 %v187
  %v253 = vunpack.c.l.b16 %v188
  %v254 = vunpack.c.h.b16 %v188
  %v255 = vpack.c.b16 %v223, %v219
  %v256 = vpack.c.b16 %v224, %v220
  %v257 = vpack.c.b16 %v225, %v221
  %v258 = vpack.c.b16 %v226, %v222
  %v259 = vpack.c.b16 %v231, %v227
  %v260 = vpack.c.b16 %v232, %v228
  %v261 = vpack.c.b16 %v233, %v229
  %v262 = vpack.c.b16 %v234, %v230
  %v263 = vpack.c.b16 %v239, %v235
  %v264 = vpack.c.b16 %v240, %v236
  %v265 = vpack.c.b16 %v241, %v237
  %v266 = vpack.c.b16 %v242, %v238
  %v267 = vpack.c.b16 %v247, %v243
  %v268 = vpack.c.b16 %v248, %v244
  %v269 = vpack.c.b16 %v249, %v245
  %v270 = vpack.c.b16 %v250, %v246
  %v271 = vpack.c.b16 %v251, %v251
  %v272 = vpack.c.b16 %v252, %v252
  %v273 = vpack.c.b16 %v253, %v253
  %v274 = vpack.c.b16 %v254, %v254
  %vm291 = vcmask 588800
  %v293 = vsel %vm291, %v197, 0
  %v296 = vsel %vm291, %v198, 0
  %v299 = vsel %vm291, %v199, 0
  %v302 = vsel %vm291, %v200, 0
  %vm304 = vcmask 1043456
  %v306 = vsel %vm304, %v271, 0
  %v309 = vsel %vm304, %v272, 0
  %v312 = vsel %vm304, %v273, 0
  %v315 = vsel %vm304, %v274, 0
  %317 = vmatprep.subr.bf16.mxu0 0
  %318 = vmatpush1.bf16.msra.mxu0 0
  %319 = vmatprep.subr.bf16.mxu0 0
  %320 = vmatpush1.bf16.msra.mxu0 0
  %321 = vmatprep.subr.bf16.mxu0 0
  %322 = vmatpush1.bf16.msra.mxu0 0
  %323 = vmatprep.subr.bf16.mxu0 %v309
  %324 = vmatpush1.bf16.msra.mxu0 %v306
  %325 = vmatprep.subr.bf16.mxu0 %v268
  %326 = vmatpush1.bf16.msra.mxu0 %v267
  %327 = vmatprep.subr.bf16.mxu0 %v264
  %328 = vmatpush1.bf16.msra.mxu0 %v263
  %329 = vmatprep.subr.bf16.mxu0 %v260
  %330 = vmatpush1.bf16.msra.mxu0 %v259
  %331 = vmatprep.subr.bf16.mxu0 %v256
  %332 = vmatpush1.bf16.msra.mxu0 %v255
  %333 = vmatprep.subr.bf16.mxu0 0
  %334 = vmatpush2.bf16.msra.mxu0 0
  %335 = vmatprep.subr.bf16.mxu0 0
  %336 = vmatpush2.bf16.msra.mxu0 0
  %337 = vmatprep.subr.bf16.mxu0 0
  %338 = vmatpush2.bf16.msra.mxu0 0
  %339 = vmatprep.subr.bf16.mxu0 0
  %340 = vmatpush2.bf16.msra.mxu0 0
  %341 = vmatprep.subr.bf16.mxu0 0
  %342 = vmatpush2.bf16.msra.mxu0 0
  %343 = vmatprep.subr.bf16.mxu0 0
  %344 = vmatpush2.bf16.msra.mxu0 0
  %345 = vmatprep.subr.bf16.mxu0 0
  %346 = vmatpush2.bf16.msra.mxu0 0
  %347 = vmatprep.subr.bf16.mxu0 0
  %348 = vmatpush2.bf16.msra.mxu0 0
  %349 = vmatprep.mubr.bf16.mxu0 0
  %350 = vmatmul.mubr.bf16.gmra.mxu0 %v293
  %v351 = vpop.f32.mrf.mxu0
  %v352 = vadd.f32 0.0, %v351
  %v353 = vpop.f32.mrf.mxu0
  %v354 = vadd.f32 0.0, %v353
  %v355 = vpop.f32.mrf.mxu0
  %v356 = vadd.f32 0.0, %v355
  %v357 = vpop.f32.mrf.mxu0
  %v358 = vadd.f32 0.0, %v357
  %359 = vmatprep.mubr.bf16.mxu0 0
  %360 = vmatmul.mubr.bf16.gmra.mxu0 %v296
  %v361 = vpop.f32.mrf.mxu0
  %v362 = vadd.f32 0.0, %v361
  %v363 = vpop.f32.mrf.mxu0
  %v364 = vadd.f32 0.0, %v363
  %v365 = vpop.f32.mrf.mxu0
  %v366 = vadd.f32 0.0, %v365
  %v367 = vpop.f32.mrf.mxu0
  %v368 = vadd.f32 0.0, %v367
  %369 = vmatprep.mubr.bf16.mxu0 0
  %370 = vmatmul.mubr.bf16.gmra.mxu0 %v299
  %v371 = vpop.f32.mrf.mxu0
  %v372 = vadd.f32 0.0, %v371
  %v373 = vpop.f32.mrf.mxu0
  %v374 = vadd.f32 0.0, %v373
  %v375 = vpop.f32.mrf.mxu0
  %v376 = vadd.f32 0.0, %v375
  %v377 = vpop.f32.mrf.mxu0
  %v378 = vadd.f32 0.0, %v377
  %379 = vmatprep.mubr.bf16.mxu0 0
  %380 = vmatmul.mubr.bf16.gmra.mxu0 %v302
  %v381 = vpop.f32.mrf.mxu0
  %v382 = vadd.f32 0.0, %v381
  %v383 = vpop.f32.mrf.mxu0
  %v384 = vadd.f32 0.0, %v383
  %v385 = vpop.f32.mrf.mxu0
  %v386 = vadd.f32 0.0, %v385
  %v387 = vpop.f32.mrf.mxu0
  %v388 = vadd.f32 0.0, %v387
  %389 = vdwg.mxu0
  %390 = vmatprep.subr.bf16.mxu0 0
  %391 = vmatpush1.bf16.msra.mxu0 0
  %392 = vmatprep.subr.bf16.mxu0 0
  %393 = vmatpush1.bf16.msra.mxu0 0
  %394 = vmatprep.subr.bf16.mxu0 0
  %395 = vmatpush1.bf16.msra.mxu0 0
  %396 = vmatprep.subr.bf16.mxu0 %v315
  %397 = vmatpush1.bf16.msra.mxu0 %v312
  %398 = vmatprep.subr.bf16.mxu0 %v270
  %399 = vmatpush1.bf16.msra.mxu0 %v269
  %400 = vmatprep.subr.bf16.mxu0 %v266
  %401 = vmatpush1.bf16.msra.mxu0 %v265
  %402 = vmatprep.subr.bf16.mxu0 %v262
  %403 = vmatpush1.bf16.msra.mxu0 %v261
  %404 = vmatprep.subr.bf16.mxu0 %v258
  %405 = vmatpush1.bf16.msra.mxu0 %v257
  %406 = vmatprep.subr.bf16.mxu0 0
  %407 = vmatpush2.bf16.msra.mxu0 0
  %408 = vmatprep.subr.bf16.mxu0 0
  %409 = vmatpush2.bf16.msra.mxu0 0
  %410 = vmatprep.subr.bf16.mxu0 0
  %411 = vmatpush2.bf16.msra.mxu0 0
  %412 = vmatprep.subr.bf16.mxu0 0
  %413 = vmatpush2.bf16.msra.mxu0 0
  %414 = vmatprep.subr.bf16.mxu0 0
  %415 = vmatpush2.bf16.msra.mxu0 0
  %416 = vmatprep.subr.bf16.mxu0 0
  %417 = vmatpush2.bf16.msra.mxu0 0
  %418 = vmatprep.subr.bf16.mxu0 0
  %419 = vmatpush2.bf16.msra.mxu0 0
  %420 = vmatprep.subr.bf16.mxu0 0
  %421 = vmatpush2.bf16.msra.mxu0 0
  %422 = vmatprep.mubr.bf16.mxu0 0
  %423 = vmatmul.mubr.bf16.gmra.mxu0 %v293
  %v424 = vpop.f32.mrf.mxu0
  %v425 = vadd.f32 0.0, %v424
  %v426 = vpop.f32.mrf.mxu0
  %v427 = vadd.f32 0.0, %v426
  %v428 = vpop.f32.mrf.mxu0
  %v429 = vadd.f32 0.0, %v428
  %v430 = vpop.f32.mrf.mxu0
  %v431 = vadd.f32 0.0, %v430
  %432 = vmatprep.mubr.bf16.mxu0 0
  %433 = vmatmul.mubr.bf16.gmra.mxu0 %v296
  %v434 = vpop.f32.mrf.mxu0
  %v435 = vadd.f32 0.0, %v434
  %v436 = vpop.f32.mrf.mxu0
  %v437 = vadd.f32 0.0, %v436
  %v438 = vpop.f32.mrf.mxu0
  %v439 = vadd.f32 0.0, %v438
  %v440 = vpop.f32.mrf.mxu0
  %v441 = vadd.f32 0.0, %v440
  %442 = vmatprep.mubr.bf16.mxu0 0
  %443 = vmatmul.mubr.bf16.gmra.mxu0 %v299
  %v444 = vpop.f32.mrf.mxu0
  %v445 = vadd.f32 0.0, %v444
  %v446 = vpop.f32.mrf.mxu0
  %v447 = vadd.f32 0.0, %v446
  %v448 = vpop.f32.mrf.mxu0
  %v449 = vadd.f32 0.0, %v448
  %v450 = vpop.f32.mrf.mxu0
  %v451 = vadd.f32 0.0, %v450
  %452 = vmatprep.mubr.bf16.mxu0 0
  %453 = vmatmul.mubr.bf16.gmra.mxu0 %v302
  %v454 = vpop.f32.mrf.mxu0
  %v455 = vadd.f32 0.0, %v454
  %v456 = vpop.f32.mrf.mxu0
  %v457 = vadd.f32 0.0, %v456
  %v458 = vpop.f32.mrf.mxu0
  %v459 = vadd.f32 0.0, %v458
  %v460 = vpop.f32.mrf.mxu0
  %v461 = vadd.f32 0.0, %v460
  %462 = vdwg.mxu0
  %v471 = vunpack.c.l.b16 %v21
  %v472 = vunpack.c.l.b16 %v22
  %v473 = vunpack.c.l.b16 %v23
  %v474 = vunpack.c.l.b16 %v24
  %v475 = vunpack.c.l.b16 %v25
  %v476 = vunpack.c.l.b16 %v26
  %v477 = vunpack.c.l.b16 %v27
  %v478 = vunpack.c.l.b16 %v28
  %v479 = vpack.c.b16 %v472, %v471
  %v480 = vpack.c.b16 %v474, %v473
  %v481 = vpack.c.b16 %v476, %v475
  %v482 = vpack.c.b16 %v478, %v477
  %v501 = vunpack.c.l.b16 %v29
  %v502 = vunpack.c.h.b16 %v29
  %v503 = vunpack.c.l.b16 %v30
  %v504 = vunpack.c.h.b16 %v30
  %v505 = vunpack.c.l.b16 %v31
  %v506 = vunpack.c.h.b16 %v31
  %v507 = vunpack.c.l.b16 %v32
  %v508 = vunpack.c.h.b16 %v32
  %v509 = vunpack.c.l.b16 %v33
  %v510 = vunpack.c.h.b16 %v33
  %v511 = vunpack.c.l.b16 %v34
  %v512 = vunpack.c.h.b16 %v34
  %v513 = vunpack.c.l.b16 %v35
  %v514 = vunpack.c.h.b16 %v35
  %v515 = vunpack.c.l.b16 %v36
  %v516 = vunpack.c.h.b16 %v36
  %v517 = vunpack.c.l.b16 %v37
  %v518 = vunpack.c.h.b16 %v37
  %v519 = vunpack.c.l.b16 %v38
  %v520 = vunpack.c.h.b16 %v38
  %v521 = vunpack.c.l.b16 %v39
  %v522 = vunpack.c.h.b16 %v39
  %v523 = vunpack.c.l.b16 %v40
  %v524 = vunpack.c.h.b16 %v40
  %v525 = vunpack.c.l.b16 %v41
  %v526 = vunpack.c.h.b16 %v41
  %v527 = vunpack.c.l.b16 %v42
  %v528 = vunpack.c.h.b16 %v42
  %v529 = vunpack.c.l.b16 %v43
  %v530 = vunpack.c.h.b16 %v43
  %v531 = vunpack.c.l.b16 %v44
  %v532 = vunpack.c.h.b16 %v44
  %v533 = vunpack.c.l.b16 %v45
  %v534 = vunpack.c.h.b16 %v45
  %v535 = vunpack.c.l.b16 %v46
  %v536 = vunpack.c.h.b16 %v46
  %v537 = vpack.c.b16 %v505, %v501
  %v538 = vpack.c.b16 %v506, %v502
  %v539 = vpack.c.b16 %v507, %v503
  %v540 = vpack.c.b16 %v508, %v504
  %v541 = vpack.c.b16 %v513, %v509
  %v542 = vpack.c.b16 %v514, %v510
  %v543 = vpack.c.b16 %v515, %v511
  %v544 = vpack.c.b16 %v516, %v512
  %v545 = vpack.c.b16 %v521, %v517
  %v546 = vpack.c.b16 %v522, %v518
  %v547 = vpack.c.b16 %v523, %v519
  %v548 = vpack.c.b16 %v524, %v520
  %v549 = vpack.c.b16 %v529, %v525
  %v550 = vpack.c.b16 %v530, %v526
  %v551 = vpack.c.b16 %v531, %v527
  %v552 = vpack.c.b16 %v532, %v528
  %v553 = vpack.c.b16 %v533, %v533
  %v554 = vpack.c.b16 %v534, %v534
  %v555 = vpack.c.b16 %v535, %v535
  %v556 = vpack.c.b16 %v536, %v536
  %v574 = vsel %vm291, %v479, 0
  %v577 = vsel %vm291, %v480, 0
  %v580 = vsel %vm291, %v481, 0
  %v583 = vsel %vm291, %v482, 0
  %v586 = vsel %vm304, %v553, 0
  %v589 = vsel %vm304, %v554, 0
  %v592 = vsel %vm304, %v555, 0
  %v595 = vsel %vm304, %v556, 0
  %597 = vmatprep.subr.bf16.mxu0 0
  %598 = vmatpush1.bf16.msra.mxu0 0
  %599 = vmatprep.subr.bf16.mxu0 0
  %600 = vmatpush1.bf16.msra.mxu0 0
  %601 = vmatprep.subr.bf16.mxu0 0
  %602 = vmatpush1.bf16.msra.mxu0 0
  %603 = vmatprep.subr.bf16.mxu0 %v589
  %604 = vmatpush1.bf16.msra.mxu0 %v586
  %605 = vmatprep.subr.bf16.mxu0 %v550
  %606 = vmatpush1.bf16.msra.mxu0 %v549
  %607 = vmatprep.subr.bf16.mxu0 %v546
  %608 = vmatpush1.bf16.msra.mxu0 %v545
  %609 = vmatprep.subr.bf16.mxu0 %v542
  %610 = vmatpush1.bf16.msra.mxu0 %v541
  %611 = vmatprep.subr.bf16.mxu0 %v538
  %612 = vmatpush1.bf16.msra.mxu0 %v537
  %613 = vmatprep.subr.bf16.mxu0 0
  %614 = vmatpush2.bf16.msra.mxu0 0
  %615 = vmatprep.subr.bf16.mxu0 0
  %616 = vmatpush2.bf16.msra.mxu0 0
  %617 = vmatprep.subr.bf16.mxu0 0
  %618 = vmatpush2.bf16.msra.mxu0 0
  %619 = vmatprep.subr.bf16.mxu0 0
  %620 = vmatpush2.bf16.msra.mxu0 0
  %621 = vmatprep.subr.bf16.mxu0 0
  %622 = vmatpush2.bf16.msra.mxu0 0
  %623 = vmatprep.subr.bf16.mxu0 0
  %624 = vmatpush2.bf16.msra.mxu0 0
  %625 = vmatprep.subr.bf16.mxu0 0
  %626 = vmatpush2.bf16.msra.mxu0 0
  %627 = vmatprep.subr.bf16.mxu0 0
  %628 = vmatpush2.bf16.msra.mxu0 0
  %629 = vmatprep.mubr.bf16.mxu0 0
  %630 = vmatmul.mubr.bf16.gmra.mxu0 %v574
  %v631 = vpop.f32.mrf.mxu0
  %v632 = vadd.f32 %v352, %v631
  %v633 = vpop.f32.mrf.mxu0
  %v634 = vadd.f32 %v354, %v633
  %v635 = vpop.f32.mrf.mxu0
  %v636 = vadd.f32 %v356, %v635
  %v637 = vpop.f32.mrf.mxu0
  %v638 = vadd.f32 %v358, %v637
  %639 = vmatprep.mubr.bf16.mxu0 0
  %640 = vmatmul.mubr.bf16.gmra.mxu0 %v577
  %v641 = vpop.f32.mrf.mxu0
  %v642 = vadd.f32 %v362, %v641
  %v643 = vpop.f32.mrf.mxu0
  %v644 = vadd.f32 %v364, %v643
  %v645 = vpop.f32.mrf.mxu0
  %v646 = vadd.f32 %v366, %v645
  %v647 = vpop.f32.mrf.mxu0
  %v648 = vadd.f32 %v368, %v647
  %649 = vmatprep.mubr.bf16.mxu0 0
  %650 = vmatmul.mubr.bf16.gmra.mxu0 %v580
  %v651 = vpop.f32.mrf.mxu0
  %v652 = vadd.f32 %v372, %v651
  %v653 = vpop.f32.mrf.mxu0
  %v654 = vadd.f32 %v374, %v653
  %v655 = vpop.f32.mrf.mxu0
  %v656 = vadd.f32 %v376, %v655
  %v657 = vpop.f32.mrf.mxu0
  %v658 = vadd.f32 %v378, %v657
  %659 = vmatprep.mubr.bf16.mxu0 0
  %660 = vmatmul.mubr.bf16.gmra.mxu0 %v583
  %v661 = vpop.f32.mrf.mxu0
  %v662 = vadd.f32 %v382, %v661
  %v663 = vpop.f32.mrf.mxu0
  %v664 = vadd.f32 %v384, %v663
  %v665 = vpop.f32.mrf.mxu0
  %v666 = vadd.f32 %v386, %v665
  %v667 = vpop.f32.mrf.mxu0
  %v668 = vadd.f32 %v388, %v667
  %669 = vdwg.mxu0
  %670 = vmatprep.subr.bf16.mxu0 0
  %671 = vmatpush1.bf16.msra.mxu0 0
  %672 = vmatprep.subr.bf16.mxu0 0
  %673 = vmatpush1.bf16.msra.mxu0 0
  %674 = vmatprep.subr.bf16.mxu0 0
  %675 = vmatpush1.bf16.msra.mxu0 0
  %676 = vmatprep.subr.bf16.mxu0 %v595
  %677 = vmatpush1.bf16.msra.mxu0 %v592
  %678 = vmatprep.subr.bf16.mxu0 %v552
  %679 = vmatpush1.bf16.msra.mxu0 %v551
  %680 = vmatprep.subr.bf16.mxu0 %v548
  %681 = vmatpush1.bf16.msra.mxu0 %v547
  %682 = vmatprep.subr.bf16.mxu0 %v544
  %683 = vmatpush1.bf16.msra.mxu0 %v543
  %684 = vmatprep.subr.bf16.mxu0 %v540
  %685 = vmatpush1.bf16.msra.mxu0 %v539
  %686 = vmatprep.subr.bf16.mxu0 0
  %687 = vmatpush2.bf16.msra.mxu0 0
  %688 = vmatprep.subr.bf16.mxu0 0
  %689 = vmatpush2.bf16.msra.mxu0 0
  %690 = vmatprep.subr.bf16.mxu0 0
  %691 = vmatpush2.bf16.msra.mxu0 0
  %692 = vmatprep.subr.bf16.mxu0 0
  %693 = vmatpush2.bf16.msra.mxu0 0
  %694 = vmatprep.subr.bf16.mxu0 0
  %695 = vmatpush2.bf16.msra.mxu0 0
  %696 = vmatprep.subr.bf16.mxu0 0
  %697 = vmatpush2.bf16.msra.mxu0 0
  %698 = vmatprep.subr.bf16.mxu0 0
  %699 = vmatpush2.bf16.msra.mxu0 0
  %700 = vmatprep.subr.bf16.mxu0 0
  %701 = vmatpush2.bf16.msra.mxu0 0
  %702 = vmatprep.mubr.bf16.mxu0 0
  %703 = vmatmul.mubr.bf16.gmra.mxu0 %v574
  %v704 = vpop.f32.mrf.mxu0
  %v705 = vadd.f32 %v425, %v704
  %v706 = vpop.f32.mrf.mxu0
  %v707 = vadd.f32 %v427, %v706
  %v708 = vpop.f32.mrf.mxu0
  %v709 = vadd.f32 %v429, %v708
  %v710 = vpop.f32.mrf.mxu0
  %v711 = vadd.f32 %v431, %v710
  %712 = vmatprep.mubr.bf16.mxu0 0
  %713 = vmatmul.mubr.bf16.gmra.mxu0 %v577
  %v714 = vpop.f32.mrf.mxu0
  %v715 = vadd.f32 %v435, %v714
  %v716 = vpop.f32.mrf.mxu0
  %v717 = vadd.f32 %v437, %v716
  %v718 = vpop.f32.mrf.mxu0
  %v719 = vadd.f32 %v439, %v718
  %v720 = vpop.f32.mrf.mxu0
  %v721 = vadd.f32 %v441, %v720
  %722 = vmatprep.mubr.bf16.mxu0 0
  %723 = vmatmul.mubr.bf16.gmra.mxu0 %v580
  %v724 = vpop.f32.mrf.mxu0
  %v725 = vadd.f32 %v445, %v724
  %v726 = vpop.f32.mrf.mxu0
  %v727 = vadd.f32 %v447, %v726
  %v728 = vpop.f32.mrf.mxu0
  %v729 = vadd.f32 %v449, %v728
  %v730 = vpop.f32.mrf.mxu0
  %v731 = vadd.f32 %v451, %v730
  %732 = vmatprep.mubr.bf16.mxu0 0
  %733 = vmatmul.mubr.bf16.gmra.mxu0 %v583
  %v734 = vpop.f32.mrf.mxu0
  %v735 = vadd.f32 %v455, %v734
  %v736 = vpop.f32.mrf.mxu0
  %v737 = vadd.f32 %v457, %v736
  %v738 = vpop.f32.mrf.mxu0
  %v739 = vadd.f32 %v459, %v738
  %v740 = vpop.f32.mrf.mxu0
  %v741 = vadd.f32 %v461, %v740
  %742 = vdwg.mxu0
  %v743 = vld [vmem:[%s0] sm:$0xe]
  %v744 = vld [vmem:[%s0 + $0xc] sm:$0xe]
  %v745 = vld [vmem:[%s0 + $0x18] sm:$0xe]
  %v746 = vld [vmem:[%s0 + $0x24] sm:$0xe]
  %v747 = vld [vmem:[%s0 + $0x30] sm:$0xe]
  %v748 = vld [vmem:[%s0 + $0x3c] sm:$0xe]
  %v749 = vld [vmem:[%s0 + $0x48] sm:$0xe]
  %v750 = vld [vmem:[%s0 + $0x54] sm:$0xe]
  %vm767 = vcmask 1042432
  %vm768 = vcmask 1046532
  %vm769 = vmor %vm767, %vm768
  %v770 = vrot.slane %v743, 5
  %v771 = vrot.slane %v770, 4
  %v772 = vrot.slane %v47, 5
  %v773 = vsel %vm769, %v771, %v772
  %v774 = vrot.slane %v744, 5
  %v775 = vrot.slane %v774, 4
  %v776 = vrot.slane %v48, 5
  %v777 = vsel %vm769, %v775, %v776
  %v778 = vrot.slane %v745, 5
  %v779 = vrot.slane %v778, 4
  %v780 = vrot.slane %v49, 5
  %v781 = vsel %vm769, %v779, %v780
  %v782 = vrot.slane %v746, 5
  %v783 = vrot.slane %v782, 4
  %v784 = vrot.slane %v50, 5
  %v785 = vsel %vm769, %v783, %v784
  %v786 = vrot.slane %v747, 5
  %v787 = vrot.slane %v786, 4
  %v788 = vrot.slane %v51, 5
  %v789 = vsel %vm769, %v787, %v788
  %v790 = vrot.slane %v748, 5
  %v791 = vrot.slane %v790, 4
  %v792 = vrot.slane %v52, 5
  %v793 = vsel %vm769, %v791, %v792
  %v794 = vrot.slane %v749, 5
  %v795 = vrot.slane %v794, 4
  %v796 = vrot.slane %v53, 5
  %v797 = vsel %vm769, %v795, %v796
  %v798 = vrot.slane %v750, 5
  %v799 = vrot.slane %v798, 4
  %v800 = vrot.slane %v54, 5
  %v801 = vsel %vm769, %v799, %v800
  %s802 = scalar_lea.vmem %s1, 288
  %v803 = vld [vmem:[%s802] sm:$0xff]
  %v804 = vld [vmem:[%s802 + $0x8] sm:$0xff]
  %v805 = vld [vmem:[%s802 + $0x10] sm:$0xff]
  %v806 = vld [vmem:[%s802 + $0x18] sm:$0xff]
  %v807 = vld [vmem:[%s802 + $0x20] sm:$0xff]
  %v808 = vld [vmem:[%s802 + $0x28] sm:$0xff]
  %v809 = vld [vmem:[%s802 + $0x30] sm:$0xff]
  %v810 = vld [vmem:[%s802 + $0x38] sm:$0xff]
  %v811 = vld [vmem:[%s802 + $0x40] sm:$0xff]
  %v812 = vld [vmem:[%s802 + $0x48] sm:$0xff]
  %v813 = vld [vmem:[%s802 + $0x50] sm:$0xff]
  %v814 = vld [vmem:[%s802 + $0x58] sm:$0xff]
  %v815 = vld [vmem:[%s802 + $0x60] sm:$0xff]
  %v816 = vld [vmem:[%s802 + $0x68] sm:$0xff]
  %v817 = vld [vmem:[%s802 + $0x70] sm:$0xff]
  %v818 = vld [vmem:[%s802 + $0x78] sm:$0xff]
  %v819 = vld [vmem:[%s802 + $0x80] sm:$0xff]
  %v820 = vld [vmem:[%s802 + $0x88] sm:$0xff]
  %v821 = vunpack.c.l.b16 %v773
  %v822 = vunpack.c.l.b16 %v777
  %v823 = vunpack.c.l.b16 %v781
  %v824 = vunpack.c.l.b16 %v785
  %v825 = vunpack.c.l.b16 %v789
  %v826 = vunpack.c.l.b16 %v793
  %v827 = vunpack.c.l.b16 %v797
  %v828 = vunpack.c.l.b16 %v801
  %v829 = vpack.c.b16 %v822, %v821
  %v830 = vpack.c.b16 %v824, %v823
  %v831 = vpack.c.b16 %v826, %v825
  %v832 = vpack.c.b16 %v828, %v827
  %v851 = vunpack.c.l.b16 %v803
  %v852 = vunpack.c.h.b16 %v803
  %v853 = vunpack.c.l.b16 %v804
  %v854 = vunpack.c.h.b16 %v804
  %v855 = vunpack.c.l.b16 %v805
  %v856 = vunpack.c.h.b16 %v805
  %v857 = vunpack.c.l.b16 %v806
  %v858 = vunpack.c.h.b16 %v806
  %v859 = vunpack.c.l.b16 %v807
  %v860 = vunpack.c.h.b16 %v807
  %v861 = vunpack.c.l.b16 %v808
  %v862 = vunpack.c.h.b16 %v808
  %v863 = vunpack.c.l.b16 %v809
  %v864 = vunpack.c.h.b16 %v809
  %v865 = vunpack.c.l.b16 %v810
  %v866 = vunpack.c.h.b16 %v810
  %v867 = vunpack.c.l.b16 %v811
  %v868 = vunpack.c.h.b16 %v811
  %v869 = vunpack.c.l.b16 %v812
  %v870 = vunpack.c.h.b16 %v812
  %v871 = vunpack.c.l.b16 %v813
  %v872 = vunpack.c.h.b16 %v813
  %v873 = vunpack.c.l.b16 %v814
  %v874 = vunpack.c.h.b16 %v814
  %v875 = vunpack.c.l.b16 %v815
  %v876 = vunpack.c.h.b16 %v815
  %v877 = vunpack.c.l.b16 %v816
  %v878 = vunpack.c.h.b16 %v816
  %v879 = vunpack.c.l.b16 %v817
  %v880 = vunpack.c.h.b16 %v817
  %v881 = vunpack.c.l.b16 %v818
  %v882 = vunpack.c.h.b16 %v818
  %v883 = vunpack.c.l.b16 %v819
  %v884 = vunpack.c.h.b16 %v819
  %v885 = vunpack.c.l.b16 %v820
  %v886 = vunpack.c.h.b16 %v820
  %v887 = vpack.c.b16 %v855, %v851
  %v888 = vpack.c.b16 %v856, %v852
  %v889 = vpack.c.b16 %v857, %v853
  %v890 = vpack.c.b16 %v858, %v854
  %v891 = vpack.c.b16 %v863, %v859
  %v892 = vpack.c.b16 %v864, %v860
  %v893 = vpack.c.b16 %v865, %v861
  %v894 = vpack.c.b16 %v866, %v862
  %v895 = vpack.c.b16 %v871, %v867
  %v896 = vpack.c.b16 %v872, %v868
  %v897 = vpack.c.b16 %v873, %v869
  %v898 = vpack.c.b16 %v874, %v870
  %v899 = vpack.c.b16 %v879, %v875
  %v900 = vpack.c.b16 %v880, %v876
  %v901 = vpack.c.b16 %v881, %v877
  %v902 = vpack.c.b16 %v882, %v878
  %v903 = vpack.c.b16 %v883, %v883
  %v904 = vpack.c.b16 %v884, %v884
  %v905 = vpack.c.b16 %v885, %v885
  %v906 = vpack.c.b16 %v886, %v886
  %v924 = vsel %vm291, %v829, 0
  %v927 = vsel %vm291, %v830, 0
  %v930 = vsel %vm291, %v831, 0
  %v933 = vsel %vm291, %v832, 0
  %v936 = vsel %vm304, %v903, 0
  %v939 = vsel %vm304, %v904, 0
  %v942 = vsel %vm304, %v905, 0
  %v945 = vsel %vm304, %v906, 0
  %947 = vmatprep.subr.bf16.mxu0 0
  %948 = vmatpush1.bf16.msra.mxu0 0
  %949 = vmatprep.subr.bf16.mxu0 0
  %950 = vmatpush1.bf16.msra.mxu0 0
  %951 = vmatprep.subr.bf16.mxu0 0
  %952 = vmatpush1.bf16.msra.mxu0 0
  %953 = vmatprep.subr.bf16.mxu0 %v939
  %954 = vmatpush1.bf16.msra.mxu0 %v936
  %955 = vmatprep.subr.bf16.mxu0 %v900
  %956 = vmatpush1.bf16.msra.mxu0 %v899
  %957 = vmatprep.subr.bf16.mxu0 %v896
  %958 = vmatpush1.bf16.msra.mxu0 %v895
  %959 = vmatprep.subr.bf16.mxu0 %v892
  %960 = vmatpush1.bf16.msra.mxu0 %v891
  %961 = vmatprep.subr.bf16.mxu0 %v888
  %962 = vmatpush1.bf16.msra.mxu0 %v887
  %963 = vmatprep.subr.bf16.mxu0 0
  %964 = vmatpush2.bf16.msra.mxu0 0
  %965 = vmatprep.subr.bf16.mxu0 0
  %966 = vmatpush2.bf16.msra.mxu0 0
  %967 = vmatprep.subr.bf16.mxu0 0
  %968 = vmatpush2.bf16.msra.mxu0 0
  %969 = vmatprep.subr.bf16.mxu0 0
  %970 = vmatpush2.bf16.msra.mxu0 0
  %971 = vmatprep.subr.bf16.mxu0 0
  %972 = vmatpush2.bf16.msra.mxu0 0
  %973 = vmatprep.subr.bf16.mxu0 0
  %974 = vmatpush2.bf16.msra.mxu0 0
  %975 = vmatprep.subr.bf16.mxu0 0
  %976 = vmatpush2.bf16.msra.mxu0 0
  %977 = vmatprep.subr.bf16.mxu0 0
  %978 = vmatpush2.bf16.msra.mxu0 0
  %979 = vmatprep.mubr.bf16.mxu0 0
  %980 = vmatmul.mubr.bf16.gmra.mxu0 %v924
  %v981 = vpop.f32.mrf.mxu0
  %v982 = vadd.f32 0.0, %v981
  %v983 = vpop.f32.mrf.mxu0
  %v984 = vadd.f32 0.0, %v983
  %v985 = vpop.f32.mrf.mxu0
  %v986 = vadd.f32 0.0, %v985
  %v987 = vpop.f32.mrf.mxu0
  %v988 = vadd.f32 0.0, %v987
  %989 = vmatprep.mubr.bf16.mxu0 0
  %990 = vmatmul.mubr.bf16.gmra.mxu0 %v927
  %v991 = vpop.f32.mrf.mxu0
  %v992 = vadd.f32 0.0, %v991
  %v993 = vpop.f32.mrf.mxu0
  %v994 = vadd.f32 0.0, %v993
  %v995 = vpop.f32.mrf.mxu0
  %v996 = vadd.f32 0.0, %v995
  %v997 = vpop.f32.mrf.mxu0
  %v998 = vadd.f32 0.0, %v997
  %999 = vmatprep.mubr.bf16.mxu0 0
  %1000 = vmatmul.mubr.bf16.gmra.mxu0 %v930
  %v1001 = vpop.f32.mrf.mxu0
  %v1002 = vadd.f32 0.0, %v1001
  %v1003 = vpop.f32.mrf.mxu0
  %v1004 = vadd.f32 0.0, %v1003
  %v1005 = vpop.f32.mrf.mxu0
  %v1006 = vadd.f32 0.0, %v1005
  %v1007 = vpop.f32.mrf.mxu0
  %v1008 = vadd.f32 0.0, %v1007
  %1009 = vmatprep.mubr.bf16.mxu0 0
  %1010 = vmatmul.mubr.bf16.gmra.mxu0 %v933
  %v1011 = vpop.f32.mrf.mxu0
  %v1012 = vadd.f32 0.0, %v1011
  %v1013 = vpop.f32.mrf.mxu0
  %v1014 = vadd.f32 0.0, %v1013
  %v1015 = vpop.f32.mrf.mxu0
  %v1016 = vadd.f32 0.0, %v1015
  %v1017 = vpop.f32.mrf.mxu0
  %v1018 = vadd.f32 0.0, %v1017
  %1019 = vdwg.mxu0
  %1020 = vmatprep.subr.bf16.mxu0 0
  %1021 = vmatpush1.bf16.msra.mxu0 0
  %1022 = vmatprep.subr.bf16.mxu0 0
  %1023 = vmatpush1.bf16.msra.mxu0 0
  %1024 = vmatprep.subr.bf16.mxu0 0
  %1025 = vmatpush1.bf16.msra.mxu0 0
  %1026 = vmatprep.subr.bf16.mxu0 %v945
  %1027 = vmatpush1.bf16.msra.mxu0 %v942
  %1028 = vmatprep.subr.bf16.mxu0 %v902
  %1029 = vmatpush1.bf16.msra.mxu0 %v901
  %1030 = vmatprep.subr.bf16.mxu0 %v898
  %1031 = vmatpush1.bf16.msra.mxu0 %v897
  %1032 = vmatprep.subr.bf16.mxu0 %v894
  %1033 = vmatpush1.bf16.msra.mxu0 %v893
  %1034 = vmatprep.subr.bf16.mxu0 %v890
  %1035 = vmatpush1.bf16.msra.mxu0 %v889
  %1036 = vmatprep.subr.bf16.mxu0 0
  %1037 = vmatpush2.bf16.msra.mxu0 0
  %1038 = vmatprep.subr.bf16.mxu0 0
  %1039 = vmatpush2.bf16.msra.mxu0 0
  %1040 = vmatprep.subr.bf16.mxu0 0
  %1041 = vmatpush2.bf16.msra.mxu0 0
  %1042 = vmatprep.subr.bf16.mxu0 0
  %1043 = vmatpush2.bf16.msra.mxu0 0
  %1044 = vmatprep.subr.bf16.mxu0 0
  %1045 = vmatpush2.bf16.msra.mxu0 0
  %1046 = vmatprep.subr.bf16.mxu0 0
  %1047 = vmatpush2.bf16.msra.mxu0 0
  %1048 = vmatprep.subr.bf16.mxu0 0
  %1049 = vmatpush2.bf16.msra.mxu0 0
  %1050 = vmatprep.subr.bf16.mxu0 0
  %1051 = vmatpush2.bf16.msra.mxu0 0
  %1052 = vmatprep.mubr.bf16.mxu0 0
  %1053 = vmatmul.mubr.bf16.gmra.mxu0 %v924
  %v1054 = vpop.f32.mrf.mxu0
  %v1055 = vadd.f32 0.0, %v1054
  %v1056 = vpop.f32.mrf.mxu0
  %v1057 = vadd.f32 0.0, %v1056
  %v1058 = vpop.f32.mrf.mxu0
  %v1059 = vadd.f32 0.0, %v1058
  %v1060 = vpop.f32.mrf.mxu0
  %v1061 = vadd.f32 0.0, %v1060
  %1062 = vmatprep.mubr.bf16.mxu0 0
  %1063 = vmatmul.mubr.bf16.gmra.mxu0 %v927
  %v1064 = vpop.f32.mrf.mxu0
  %v1065 = vadd.f32 0.0, %v1064
  %v1066 = vpop.f32.mrf.mxu0
  %v1067 = vadd.f32 0.0, %v1066
  %v1068 = vpop.f32.mrf.mxu0
  %v1069 = vadd.f32 0.0, %v1068
  %v1070 = vpop.f32.mrf.mxu0
  %v1071 = vadd.f32 0.0, %v1070
  %1072 = vmatprep.mubr.bf16.mxu0 0
  %1073 = vmatmul.mubr.bf16.gmra.mxu0 %v930
  %v1074 = vpop.f32.mrf.mxu0
  %v1075 = vadd.f32 0.0, %v1074
  %v1076 = vpop.f32.mrf.mxu0
  %v1077 = vadd.f32 0.0, %v1076
  %v1078 = vpop.f32.mrf.mxu0
  %v1079 = vadd.f32 0.0, %v1078
  %v1080 = vpop.f32.mrf.mxu0
  %v1081 = vadd.f32 0.0, %v1080
  %1082 = vmatprep.mubr.bf16.mxu0 0
  %1083 = vmatmul.mubr.bf16.gmra.mxu0 %v933
  %v1084 = vpop.f32.mrf.mxu0
  %v1085 = vadd.f32 0.0, %v1084
  %v1086 = vpop.f32.mrf.mxu0
  %v1087 = vadd.f32 0.0, %v1086
  %v1088 = vpop.f32.mrf.mxu0
  %v1089 = vadd.f32 0.0, %v1088
  %v1090 = vpop.f32.mrf.mxu0
  %v1091 = vadd.f32 0.0, %v1090
  %1092 = vdwg.mxu0
  %v1093 = vadd.f32 %v632, %v982
  %v1094 = vadd.f32 %v634, %v984
  %v1095 = vadd.f32 %v705, %v1055
  %v1096 = vadd.f32 %v707, %v1057
  %v1097 = vadd.f32 %v636, %v986
  %v1098 = vadd.f32 %v638, %v988
  %v1099 = vadd.f32 %v709, %v1059
  %v1100 = vadd.f32 %v711, %v1061
  %v1101 = vadd.f32 %v642, %v992
  %v1102 = vadd.f32 %v644, %v994
  %v1103 = vadd.f32 %v715, %v1065
  %v1104 = vadd.f32 %v717, %v1067
  %v1105 = vadd.f32 %v646, %v996
  %v1106 = vadd.f32 %v648, %v998
  %v1107 = vadd.f32 %v719, %v1069
  %v1108 = vadd.f32 %v721, %v1071
  %v1109 = vadd.f32 %v652, %v1002
  %v1110 = vadd.f32 %v654, %v1004
  %v1111 = vadd.f32 %v725, %v1075
  %v1112 = vadd.f32 %v727, %v1077
  %v1113 = vadd.f32 %v656, %v1006
  %v1114 = vadd.f32 %v658, %v1008
  %v1115 = vadd.f32 %v729, %v1079
  %v1116 = vadd.f32 %v731, %v1081
  %v1117 = vadd.f32 %v662, %v1012
  %v1118 = vadd.f32 %v664, %v1014
  %v1119 = vadd.f32 %v735, %v1085
  %v1120 = vadd.f32 %v737, %v1087
  %v1121 = vadd.f32 %v666, %v1016
  %v1122 = vadd.f32 %v668, %v1018
  %v1123 = vadd.f32 %v739, %v1089
  %v1124 = vadd.f32 %v741, %v1091
  %v1125 = vld [vmem:[%s2] sm:$0xf]
  %v1127 = vlaneseq
  %v1128 = vshrl.u32 %v1127, 7
  %v1129 = vsub.s32 0, %v1128
  %v1130 = vrot.slane %v1125, %v1129
  %v1131 = vlaneseq
  %v1132 = vshrl.u32 %v1131, 7
  %v1133 = vsub.s32 1, %v1132
  %v1134 = vrot.slane %v1125, %v1133
  %v1135 = vlaneseq
  %v1136 = vshrl.u32 %v1135, 7
  %v1137 = vsub.s32 2, %v1136
  %v1138 = vrot.slane %v1125, %v1137
  %v1139 = vlaneseq
  %v1140 = vshrl.u32 %v1139, 7
  %v1141 = vsub.s32 3, %v1140
  %v1142 = vrot.slane %v1125, %v1141
  %v1147 = vadd.f32 %v1093, %v1130
  %v1148 = vadd.f32 %v1094, %v1134
  %v1149 = vadd.f32 %v1095, %v1138
  %v1150 = vadd.f32 %v1096, %v1142
  %v1151 = vadd.f32 %v1097, %v1130
  %v1152 = vadd.f32 %v1098, %v1134
  %v1153 = vadd.f32 %v1099, %v1138
  %v1154 = vadd.f32 %v1100, %v1142
  %v1155 = vadd.f32 %v1101, %v1130
  %v1156 = vadd.f32 %v1102, %v1134
  %v1157 = vadd.f32 %v1103, %v1138
  %v1158 = vadd.f32 %v1104, %v1142
  %v1159 = vadd.f32 %v1105, %v1130
  %v1160 = vadd.f32 %v1106, %v1134
  %v1161 = vadd.f32 %v1107, %v1138
  %v1162 = vadd.f32 %v1108, %v1142
  %v1163 = vadd.f32 %v1109, %v1130
  %v1164 = vadd.f32 %v1110, %v1134
  %v1165 = vadd.f32 %v1111, %v1138
  %v1166 = vadd.f32 %v1112, %v1142
  %v1167 = vadd.f32 %v1113, %v1130
  %v1168 = vadd.f32 %v1114, %v1134
  %v1169 = vadd.f32 %v1115, %v1138
  %v1170 = vadd.f32 %v1116, %v1142
  %v1171 = vadd.f32 %v1117, %v1130
  %v1172 = vadd.f32 %v1118, %v1134
  %v1173 = vadd.f32 %v1119, %v1138
  %v1174 = vadd.f32 %v1120, %v1142
  %v1175 = vadd.f32 %v1121, %v1130
  %v1176 = vadd.f32 %v1122, %v1134
  %v1177 = vadd.f32 %v1123, %v1138
  %v1178 = vadd.f32 %v1124, %v1142
  %v1179 = vmax.f32 %v1147, 0.0
  %v1180 = vmax.f32 %v1148, 0.0
  %v1181 = vmax.f32 %v1149, 0.0
  %v1182 = vmax.f32 %v1150, 0.0
  %v1183 = vmax.f32 %v1151, 0.0
  %v1184 = vmax.f32 %v1152, 0.0
  %v1185 = vmax.f32 %v1153, 0.0
  %v1186 = vmax.f32 %v1154, 0.0
  %v1187 = vmax.f32 %v1155, 0.0
  %v1188 = vmax.f32 %v1156, 0.0
  %v1189 = vmax.f32 %v1157, 0.0
  %v1190 = vmax.f32 %v1158, 0.0
  %v1191 = vmax.f32 %v1159, 0.0
  %v1192 = vmax.f32 %v1160, 0.0
  %v1193 = vmax.f32 %v1161, 0.0
  %v1194 = vmax.f32 %v1162, 0.0
  %v1195 = vmax.f32 %v1163, 0.0
  %v1196 = vmax.f32 %v1164, 0.0
  %v1197 = vmax.f32 %v1165, 0.0
  %v1198 = vmax.f32 %v1166, 0.0
  %v1199 = vmax.f32 %v1167, 0.0
  %v1200 = vmax.f32 %v1168, 0.0
  %v1201 = vmax.f32 %v1169, 0.0
  %v1202 = vmax.f32 %v1170, 0.0
  %v1203 = vmax.f32 %v1171, 0.0
  %v1204 = vmax.f32 %v1172, 0.0
  %v1205 = vmax.f32 %v1173, 0.0
  %v1206 = vmax.f32 %v1174, 0.0
  %v1207 = vmax.f32 %v1175, 0.0
  %v1208 = vmax.f32 %v1176, 0.0
  %v1209 = vmax.f32 %v1177, 0.0
  %v1210 = vmax.f32 %v1178, 0.0
  %v1211 = vpack.c.bf16 %v1183, %v1179
  %v1212 = vpack.c.bf16 %v1184, %v1180
  %v1213 = vpack.c.bf16 %v1185, %v1181
  %v1214 = vpack.c.bf16 %v1186, %v1182
  %v1215 = vpack.c.bf16 %v1191, %v1187
  %v1216 = vpack.c.bf16 %v1192, %v1188
  %v1217 = vpack.c.bf16 %v1193, %v1189
  %v1218 = vpack.c.bf16 %v1194, %v1190
  %v1219 = vpack.c.bf16 %v1199, %v1195
  %v1220 = vpack.c.bf16 %v1200, %v1196
  %v1221 = vpack.c.bf16 %v1201, %v1197
  %v1222 = vpack.c.bf16 %v1202, %v1198
  %v1223 = vpack.c.bf16 %v1207, %v1203
  %v1224 = vpack.c.bf16 %v1208, %v1204
  %v1225 = vpack.c.bf16 %v1209, %v1205
  %v1226 = vpack.c.bf16 %v1210, %v1206
  %v1227 = vld [vmem:[%s3] sm:$0xf]
  %v1228 = vld [vmem:[%s3 + $0x4] sm:$0xf]
  %v1229 = vld [vmem:[%s3 + $0x8] sm:$0xf]
  %v1230 = vld [vmem:[%s3 + $0xc] sm:$0xf]
  %v1231 = vld [vmem:[%s3 + $0x10] sm:$0xf]
  %v1232 = vld [vmem:[%s3 + $0x14] sm:$0xf]
  %v1233 = vld [vmem:[%s3 + $0x18] sm:$0xf]
  %v1234 = vld [vmem:[%s3 + $0x1c] sm:$0xf]
  %v1235 = vld [vmem:[%s3 + $0x20] sm:$0xf]
  %v1236 = vld [vmem:[%s3 + $0x24] sm:$0xf]
  %v1237 = vld [vmem:[%s3 + $0x28] sm:$0xf]
  %v1238 = vld [vmem:[%s3 + $0x2c] sm:$0xf]
  %v1239 = vld [vmem:[%s3 + $0x30] sm:$0xf]
  %v1240 = vld [vmem:[%s3 + $0x34] sm:$0xf]
  %v1241 = vld [vmem:[%s3 + $0x38] sm:$0xf]
  %v1242 = vld [vmem:[%s3 + $0x3c] sm:$0xf]
  %v1243 = vld [vmem:[%s3 + $0x40] sm:$0xf]
  %v1244 = vld [vmem:[%s3 + $0x44] sm:$0xf]
  %v1245 = vld [vmem:[%s3 + $0x48] sm:$0xf]
  %v1246 = vld [vmem:[%s3 + $0x4c] sm:$0xf]
  %v1247 = vld [vmem:[%s3 + $0x50] sm:$0xf]
  %v1248 = vld [vmem:[%s3 + $0x54] sm:$0xf]
  %v1249 = vld [vmem:[%s3 + $0x58] sm:$0xf]
  %v1250 = vld [vmem:[%s3 + $0x5c] sm:$0xf]
  %v1251 = vld [vmem:[%s3 + $0x60] sm:$0xf]
  %v1252 = vld [vmem:[%s3 + $0x64] sm:$0xf]
  %v1253 = vld [vmem:[%s3 + $0x68] sm:$0xf]
  %v1254 = vld [vmem:[%s3 + $0x6c] sm:$0xf]
  %v1255 = vld [vmem:[%s3 + $0x70] sm:$0xf]
  %v1256 = vld [vmem:[%s3 + $0x74] sm:$0xf]
  %v1257 = vld [vmem:[%s3 + $0x78] sm:$0xf]
  %v1258 = vld [vmem:[%s3 + $0x7c] sm:$0xf]
  %v1259 = vld [vmem:[%s3 + $0x80] sm:$0xf]
  %v1260 = vld [vmem:[%s3 + $0x84] sm:$0xf]
  %v1261 = vld [vmem:[%s3 + $0x88] sm:$0xf]
  %v1262 = vld [vmem:[%s3 + $0x8c] sm:$0xf]
  %v1263 = vld [vmem:[%s3 + $0x90] sm:$0xf]
  %v1264 = vld [vmem:[%s3 + $0x94] sm:$0xf]
  %v1265 = vld [vmem:[%s3 + $0x98] sm:$0xf]
  %v1266 = vld [vmem:[%s3 + $0x9c] sm:$0xf]
  %v1267 = vld [vmem:[%s3 + $0xa0] sm:$0xf]
  %v1268 = vld [vmem:[%s3 + $0xa4] sm:$0xf]
  %v1269 = vld [vmem:[%s3 + $0xa8] sm:$0xf]
  %v1270 = vld [vmem:[%s3 + $0xac] sm:$0xf]
  %v1271 = vld [vmem:[%s3 + $0xb0] sm:$0xf]
  %v1272 = vld [vmem:[%s3 + $0xb4] sm:$0xf]
  %v1273 = vld [vmem:[%s3 + $0xb8] sm:$0xf]
  %v1274 = vld [vmem:[%s3 + $0xbc] sm:$0xf]
  %v1275 = vld [vmem:[%s3 + $0xc0] sm:$0xf]
  %v1276 = vld [vmem:[%s3 + $0xc4] sm:$0xf]
  %v1277 = vld [vmem:[%s3 + $0xc8] sm:$0xf]
  %v1278 = vld [vmem:[%s3 + $0xcc] sm:$0xf]
  %v1279 = vld [vmem:[%s3 + $0xd0] sm:$0xf]
  %v1280 = vld [vmem:[%s3 + $0xd4] sm:$0xf]
  %v1281 = vld [vmem:[%s3 + $0xd8] sm:$0xf]
  %v1282 = vld [vmem:[%s3 + $0xdc] sm:$0xf]
  %v1283 = vld [vmem:[%s3 + $0xe0] sm:$0xf]
  %v1284 = vld [vmem:[%s3 + $0xe4] sm:$0xf]
  %v1285 = vld [vmem:[%s3 + $0xe8] sm:$0xf]
  %v1286 = vld [vmem:[%s3 + $0xec] sm:$0xf]
  %v1287 = vld [vmem:[%s3 + $0xf0] sm:$0xf]
  %v1288 = vld [vmem:[%s3 + $0xf4] sm:$0xf]
  %v1289 = vld [vmem:[%s3 + $0xf8] sm:$0xf]
  %v1290 = vld [vmem:[%s3 + $0xfc] sm:$0xf]
  %v1355 = vunpack.c.l.b16 %v1227
  %v1356 = vunpack.c.l.b16 %v1228
  %v1357 = vunpack.c.l.b16 %v1229
  %v1358 = vunpack.c.l.b16 %v1230
  %v1359 = vunpack.c.l.b16 %v1231
  %v1360 = vunpack.c.l.b16 %v1232
  %v1361 = vunpack.c.l.b16 %v1233
  %v1362 = vunpack.c.l.b16 %v1234
  %v1363 = vunpack.c.l.b16 %v1235
  %v1364 = vunpack.c.l.b16 %v1236
  %v1365 = vunpack.c.l.b16 %v1237
  %v1366 = vunpack.c.l.b16 %v1238
  %v1367 = vunpack.c.l.b16 %v1239
  %v1368 = vunpack.c.l.b16 %v1240
  %v1369 = vunpack.c.l.b16 %v1241
  %v1370 = vunpack.c.l.b16 %v1242
  %v1371 = vunpack.c.l.b16 %v1243
  %v1372 = vunpack.c.l.b16 %v1244
  %v1373 = vunpack.c.l.b16 %v1245
  %v1374 = vunpack.c.l.b16 %v1246
  %v1375 = vunpack.c.l.b16 %v1247
  %v1376 = vunpack.c.l.b16 %v1248
  %v1377 = vunpack.c.l.b16 %v1249
  %v1378 = vunpack.c.l.b16 %v1250
  %v1379 = vunpack.c.l.b16 %v1251
  %v1380 = vunpack.c.l.b16 %v1252
  %v1381 = vunpack.c.l.b16 %v1253
  %v1382 = vunpack.c.l.b16 %v1254
  %v1383 = vunpack.c.l.b16 %v1255
  %v1384 = vunpack.c.l.b16 %v1256
  %v1385 = vunpack.c.l.b16 %v1257
  %v1386 = vunpack.c.l.b16 %v1258
  %v1387 = vunpack.c.l.b16 %v1259
  %v1388 = vunpack.c.l.b16 %v1260
  %v1389 = vunpack.c.l.b16 %v1261
  %v1390 = vunpack.c.l.b16 %v1262
  %v1391 = vunpack.c.l.b16 %v1263
  %v1392 = vunpack.c.l.b16 %v1264
  %v1393 = vunpack.c.l.b16 %v1265
  %v1394 = vunpack.c.l.b16 %v1266
  %v1395 = vunpack.c.l.b16 %v1267
  %v1396 = vunpack.c.l.b16 %v1268
  %v1397 = vunpack.c.l.b16 %v1269
  %v1398 = vunpack.c.l.b16 %v1270
  %v1399 = vunpack.c.l.b16 %v1271
  %v1400 = vunpack.c.l.b16 %v1272
  %v1401 = vunpack.c.l.b16 %v1273
  %v1402 = vunpack.c.l.b16 %v1274
  %v1403 = vunpack.c.l.b16 %v1275
  %v1404 = vunpack.c.l.b16 %v1276
  %v1405 = vunpack.c.l.b16 %v1277
  %v1406 = vunpack.c.l.b16 %v1278
  %v1407 = vunpack.c.l.b16 %v1279
  %v1408 = vunpack.c.l.b16 %v1280
  %v1409 = vunpack.c.l.b16 %v1281
  %v1410 = vunpack.c.l.b16 %v1282
  %v1411 = vunpack.c.l.b16 %v1283
  %v1412 = vunpack.c.l.b16 %v1284
  %v1413 = vunpack.c.l.b16 %v1285
  %v1414 = vunpack.c.l.b16 %v1286
  %v1415 = vunpack.c.l.b16 %v1287
  %v1416 = vunpack.c.l.b16 %v1288
  %v1417 = vunpack.c.l.b16 %v1289
  %v1418 = vunpack.c.l.b16 %v1290
  %v1419 = vpack.c.b16 %v1356, %v1355
  %v1420 = vpack.c.b16 %v1358, %v1357
  %v1421 = vpack.c.b16 %v1360, %v1359
  %v1422 = vpack.c.b16 %v1362, %v1361
  %v1423 = vpack.c.b16 %v1364, %v1363
  %v1424 = vpack.c.b16 %v1366, %v1365
  %v1425 = vpack.c.b16 %v1368, %v1367
  %v1426 = vpack.c.b16 %v1370, %v1369
  %v1427 = vpack.c.b16 %v1372, %v1371
  %v1428 = vpack.c.b16 %v1374, %v1373
  %v1429 = vpack.c.b16 %v1376, %v1375
  %v1430 = vpack.c.b16 %v1378, %v1377
  %v1431 = vpack.c.b16 %v1380, %v1379
  %v1432 = vpack.c.b16 %v1382, %v1381
  %v1433 = vpack.c.b16 %v1384, %v1383
  %v1434 = vpack.c.b16 %v1386, %v1385
  %v1435 = vpack.c.b16 %v1388, %v1387
  %v1436 = vpack.c.b16 %v1390, %v1389
  %v1437 = vpack.c.b16 %v1392, %v1391
  %v1438 = vpack.c.b16 %v1394, %v1393
  %v1439 = vpack.c.b16 %v1396, %v1395
  %v1440 = vpack.c.b16 %v1398, %v1397
  %v1441 = vpack.c.b16 %v1400, %v1399
  %v1442 = vpack.c.b16 %v1402, %v1401
  %v1443 = vpack.c.b16 %v1404, %v1403
  %v1444 = vpack.c.b16 %v1406, %v1405
  %v1445 = vpack.c.b16 %v1408, %v1407
  %v1446 = vpack.c.b16 %v1410, %v1409
  %v1447 = vpack.c.b16 %v1412, %v1411
  %v1448 = vpack.c.b16 %v1414, %v1413
  %v1449 = vpack.c.b16 %v1416, %v1415
  %v1450 = vpack.c.b16 %v1418, %v1417
  %1483 = vmatprep.subr.bf16.mxu0 0
  %1484 = vmatpush1.bf16.msra.mxu0 %v1426
  %1485 = vmatprep.subr.bf16.mxu0 0
  %1486 = vmatpush1.bf16.msra.mxu0 %v1425
  %1487 = vmatprep.subr.bf16.mxu0 0
  %1488 = vmatpush1.bf16.msra.mxu0 %v1424
  %1489 = vmatprep.subr.bf16.mxu0 0
  %1490 = vmatpush1.bf16.msra.mxu0 %v1423
  %1491 = vmatprep.subr.bf16.mxu0 0
  %1492 = vmatpush1.bf16.msra.mxu0 %v1422
  %1493 = vmatprep.subr.bf16.mxu0 0
  %1494 = vmatpush1.bf16.msra.mxu0 %v1421
  %1495 = vmatprep.subr.bf16.mxu0 0
  %1496 = vmatpush1.bf16.msra.mxu0 %v1420
  %1497 = vmatprep.subr.bf16.mxu0 0
  %1498 = vmatpush1.bf16.msra.mxu0 %v1419
  %1499 = vmatprep.subr.bf16.mxu0 0
  %1500 = vmatpush2.bf16.msra.mxu0 %v1434
  %1501 = vmatprep.subr.bf16.mxu0 0
  %1502 = vmatpush2.bf16.msra.mxu0 %v1433
  %1503 = vmatprep.subr.bf16.mxu0 0
  %1504 = vmatpush2.bf16.msra.mxu0 %v1432
  %1505 = vmatprep.subr.bf16.mxu0 0
  %1506 = vmatpush2.bf16.msra.mxu0 %v1431
  %1507 = vmatprep.subr.bf16.mxu0 0
  %1508 = vmatpush2.bf16.msra.mxu0 %v1430
  %1509 = vmatprep.subr.bf16.mxu0 0
  %1510 = vmatpush2.bf16.msra.mxu0 %v1429
  %1511 = vmatprep.subr.bf16.mxu0 0
  %1512 = vmatpush2.bf16.msra.mxu0 %v1428
  %1513 = vmatprep.subr.bf16.mxu0 0
  %1514 = vmatpush2.bf16.msra.mxu0 %v1427
  %1515 = vmatprep.mubr.bf16.mxu0 %v1212
  %1516 = vmatmul.mubr.bf16.gmra.mxu0 %v1211
  %v1517 = vpop.f32.mrf.mxu0
  %v1518 = vadd.f32 0.0, %v1517
  %v1519 = vpop.f32.mrf.mxu0
  %v1520 = vpop.f32.mrf.mxu0
  %v1521 = vadd.f32 0.0, %v1520
  %v1522 = vpop.f32.mrf.mxu0
  %1523 = vmatprep.mubr.bf16.mxu0 %v1216
  %1524 = vmatmul.mubr.bf16.gmra.mxu0 %v1215
  %v1525 = vpop.f32.mrf.mxu0
  %v1526 = vadd.f32 0.0, %v1525
  %v1527 = vpop.f32.mrf.mxu0
  %v1528 = vpop.f32.mrf.mxu0
  %v1529 = vadd.f32 0.0, %v1528
  %v1530 = vpop.f32.mrf.mxu0
  %1531 = vmatprep.mubr.bf16.mxu0 %v1220
  %1532 = vmatmul.mubr.bf16.gmra.mxu0 %v1219
  %v1533 = vpop.f32.mrf.mxu0
  %v1534 = vadd.f32 0.0, %v1533
  %v1535 = vpop.f32.mrf.mxu0
  %v1536 = vpop.f32.mrf.mxu0
  %v1537 = vadd.f32 0.0, %v1536
  %v1538 = vpop.f32.mrf.mxu0
  %1539 = vmatprep.mubr.bf16.mxu0 %v1224
  %1540 = vmatmul.mubr.bf16.gmra.mxu0 %v1223
  %v1541 = vpop.f32.mrf.mxu0
  %v1542 = vadd.f32 0.0, %v1541
  %v1543 = vpop.f32.mrf.mxu0
  %v1544 = vpop.f32.mrf.mxu0
  %v1545 = vadd.f32 0.0, %v1544
  %v1546 = vpop.f32.mrf.mxu0
  %1547 = vdwg.mxu0
  %1548 = vmatprep.subr.bf16.mxu0 0
  %1549 = vmatpush1.bf16.msra.mxu0 %v1442
  %1550 = vmatprep.subr.bf16.mxu0 0
  %1551 = vmatpush1.bf16.msra.mxu0 %v1441
  %1552 = vmatprep.subr.bf16.mxu0 0
  %1553 = vmatpush1.bf16.msra.mxu0 %v1440
  %1554 = vmatprep.subr.bf16.mxu0 0
  %1555 = vmatpush1.bf16.msra.mxu0 %v1439
  %1556 = vmatprep.subr.bf16.mxu0 0
  %1557 = vmatpush1.bf16.msra.mxu0 %v1438
  %1558 = vmatprep.subr.bf16.mxu0 0
  %1559 = vmatpush1.bf16.msra.mxu0 %v1437
  %1560 = vmatprep.subr.bf16.mxu0 0
  %1561 = vmatpush1.bf16.msra.mxu0 %v1436
  %1562 = vmatprep.subr.bf16.mxu0 0
  %1563 = vmatpush1.bf16.msra.mxu0 %v1435
  %1564 = vmatprep.subr.bf16.mxu0 0
  %1565 = vmatpush2.bf16.msra.mxu0 %v1450
  %1566 = vmatprep.subr.bf16.mxu0 0
  %1567 = vmatpush2.bf16.msra.mxu0 %v1449
  %1568 = vmatprep.subr.bf16.mxu0 0
  %1569 = vmatpush2.bf16.msra.mxu0 %v1448
  %1570 = vmatprep.subr.bf16.mxu0 0
  %1571 = vmatpush2.bf16.msra.mxu0 %v1447
  %1572 = vmatprep.subr.bf16.mxu0 0
  %1573 = vmatpush2.bf16.msra.mxu0 %v1446
  %1574 = vmatprep.subr.bf16.mxu0 0
  %1575 = vmatpush2.bf16.msra.mxu0 %v1445
  %1576 = vmatprep.subr.bf16.mxu0 0
  %1577 = vmatpush2.bf16.msra.mxu0 %v1444
  %1578 = vmatprep.subr.bf16.mxu0 0
  %1579 = vmatpush2.bf16.msra.mxu0 %v1443
  %1580 = vmatprep.mubr.bf16.mxu0 %v1214
  %1581 = vmatmul.mubr.bf16.gmra.mxu0 %v1213
  %v1582 = vpop.f32.mrf.mxu0
  %v1583 = vadd.f32 %v1518, %v1582
  %v1584 = vpop.f32.mrf.mxu0
  %v1585 = vpop.f32.mrf.mxu0
  %v1586 = vadd.f32 %v1521, %v1585
  %v1587 = vpop.f32.mrf.mxu0
  %1588 = vmatprep.mubr.bf16.mxu0 %v1218
  %1589 = vmatmul.mubr.bf16.gmra.mxu0 %v1217
  %v1590 = vpop.f32.mrf.mxu0
  %v1591 = vadd.f32 %v1526, %v1590
  %v1592 = vpop.f32.mrf.mxu0
  %v1593 = vpop.f32.mrf.mxu0
  %v1594 = vadd.f32 %v1529, %v1593
  %v1595 = vpop.f32.mrf.mxu0
  %1596 = vmatprep.mubr.bf16.mxu0 %v1222
  %1597 = vmatmul.mubr.bf16.gmra.mxu0 %v1221
  %v1598 = vpop.f32.mrf.mxu0
  %v1599 = vadd.f32 %v1534, %v1598
  %v1600 = vpop.f32.mrf.mxu0
  %v1601 = vpop.f32.mrf.mxu0
  %v1602 = vadd.f32 %v1537, %v1601
  %v1603 = vpop.f32.mrf.mxu0
  %1604 = vmatprep.mubr.bf16.mxu0 %v1226
  %1605 = vmatmul.mubr.bf16.gmra.mxu0 %v1225
  %v1606 = vpop.f32.mrf.mxu0
  %v1607 = vadd.f32 %v1542, %v1606
  %v1608 = vpop.f32.mrf.mxu0
  %v1609 = vpop.f32.mrf.mxu0
  %v1610 = vadd.f32 %v1545, %v1609
  %v1611 = vpop.f32.mrf.mxu0
  %1612 = vdwg.mxu0
  %v1613 = vrot.slane %v1583, 4
  %v1614 = vadd.f32 %v1583, %v1613
  %v1615 = vrot.slane %v1614, 2
  %v1616 = vadd.f32 %v1614, %v1615
  %v1617 = vrot.slane %v1616, 1
  %v1618 = vadd.f32 %v1616, %v1617
  %v1619 = vrot.slane %v1586, 4
  %v1620 = vadd.f32 %v1586, %v1619
  %v1621 = vrot.slane %v1620, 2
  %v1622 = vadd.f32 %v1620, %v1621
  %v1623 = vrot.slane %v1622, 1
  %v1624 = vadd.f32 %v1622, %v1623
  %v1625 = vrot.slane %v1591, 4
  %v1626 = vadd.f32 %v1591, %v1625
  %v1627 = vrot.slane %v1626, 2
  %v1628 = vadd.f32 %v1626, %v1627
  %v1629 = vrot.slane %v1628, 1
  %v1630 = vadd.f32 %v1628, %v1629
  %v1631 = vrot.slane %v1594, 4
  %v1632 = vadd.f32 %v1594, %v1631
  %v1633 = vrot.slane %v1632, 2
  %v1634 = vadd.f32 %v1632, %v1633
  %v1635 = vrot.slane %v1634, 1
  %v1636 = vadd.f32 %v1634, %v1635
  %v1637 = vrot.slane %v1599, 4
  %v1638 = vadd.f32 %v1599, %v1637
  %v1639 = vrot.slane %v1638, 2
  %v1640 = vadd.f32 %v1638, %v1639
  %v1641 = vrot.slane %v1640, 1
  %v1642 = vadd.f32 %v1640, %v1641
  %v1643 = vrot.slane %v1602, 4
  %v1644 = vadd.f32 %v1602, %v1643
  %v1645 = vrot.slane %v1644, 2
  %v1646 = vadd.f32 %v1644, %v1645
  %v1647 = vrot.slane %v1646, 1
  %v1648 = vadd.f32 %v1646, %v1647
  %v1649 = vrot.slane %v1607, 4
  %v1650 = vadd.f32 %v1607, %v1649
  %v1651 = vrot.slane %v1650, 2
  %v1652 = vadd.f32 %v1650, %v1651
  %v1653 = vrot.slane %v1652, 1
  %v1654 = vadd.f32 %v1652, %v1653
  %v1655 = vrot.slane %v1610, 4
  %v1656 = vadd.f32 %v1610, %v1655
  %v1657 = vrot.slane %v1656, 2
  %v1658 = vadd.f32 %v1656, %v1657
  %v1659 = vrot.slane %v1658, 1
  %v1660 = vadd.f32 %v1658, %v1659
  %v1661 = vadd.f32 %v1618, 0.0
  %v1662 = vadd.f32 %v1624, 0.0
  %v1663 = vadd.f32 %v1630, 0.0
  %v1664 = vadd.f32 %v1636, 0.0
  %v1665 = vadd.f32 %v1642, 0.0
  %v1666 = vadd.f32 %v1648, 0.0
  %v1667 = vadd.f32 %v1654, 0.0
  %v1668 = vadd.f32 %v1660, 0.0
  %v1669 = vld [vmem:[%s0 + $0x4] sm:$0xf]
  %v1670 = vld [vmem:[%s0 + $0x10] sm:$0xf]
  %v1671 = vld [vmem:[%s0 + $0x1c] sm:$0xf]
  %v1672 = vld [vmem:[%s0 + $0x28] sm:$0xf]
  %v1673 = vld [vmem:[%s0 + $0x34] sm:$0xf]
  %v1674 = vld [vmem:[%s0 + $0x40] sm:$0xf]
  %v1675 = vld [vmem:[%s0 + $0x4c] sm:$0xf]
  %v1676 = vld [vmem:[%s0 + $0x58] sm:$0xf]
  %v1677 = vld [vmem:[%s0 + $0x8] sm:$0x1]
  %v1678 = vld [vmem:[%s0 + $0x14] sm:$0x1]
  %v1679 = vld [vmem:[%s0 + $0x20] sm:$0x1]
  %v1680 = vld [vmem:[%s0 + $0x2c] sm:$0x1]
  %v1681 = vld [vmem:[%s0 + $0x38] sm:$0x1]
  %v1682 = vld [vmem:[%s0 + $0x44] sm:$0x1]
  %v1683 = vld [vmem:[%s0 + $0x50] sm:$0x1]
  %v1684 = vld [vmem:[%s0 + $0x5c] sm:$0x1]
  %v1686 = vshrl.u32 %v1669, 16
  %v1688 = vrot.slane %v1686, 4
  %v1689 = vshll.u32 %v1669, 16
  %v1691 = vrot.slane %v1689, 5
  %v1692 = vor.u32 %v1688, %v1691
  %v1693 = vrot.slane %v1692, 4
  %v1695 = vshll.u32 %v1677, 16
  %v1697 = vrot.slane %v1695, 5
  %v1698 = vsel %vm57, %v1693, %v1697
  %v1700 = vshrl.u32 %v1670, 16
  %v1702 = vrot.slane %v1700, 4
  %v1703 = vshll.u32 %v1670, 16
  %v1705 = vrot.slane %v1703, 5
  %v1706 = vor.u32 %v1702, %v1705
  %v1707 = vrot.slane %v1706, 4
  %v1709 = vshll.u32 %v1678, 16
  %v1711 = vrot.slane %v1709, 5
  %v1712 = vsel %vm57, %v1707, %v1711
  %v1714 = vshrl.u32 %v1671, 16
  %v1716 = vrot.slane %v1714, 4
  %v1717 = vshll.u32 %v1671, 16
  %v1719 = vrot.slane %v1717, 5
  %v1720 = vor.u32 %v1716, %v1719
  %v1721 = vrot.slane %v1720, 4
  %v1723 = vshll.u32 %v1679, 16
  %v1725 = vrot.slane %v1723, 5
  %v1726 = vsel %vm57, %v1721, %v1725
  %v1728 = vshrl.u32 %v1672, 16
  %v1730 = vrot.slane %v1728, 4
  %v1731 = vshll.u32 %v1672, 16
  %v1733 = vrot.slane %v1731, 5
  %v1734 = vor.u32 %v1730, %v1733
  %v1735 = vrot.slane %v1734, 4
  %v1737 = vshll.u32 %v1680, 16
  %v1739 = vrot.slane %v1737, 5
  %v1740 = vsel %vm57, %v1735, %v1739
  %v1742 = vshrl.u32 %v1673, 16
  %v1744 = vrot.slane %v1742, 4
  %v1745 = vshll.u32 %v1673, 16
  %v1747 = vrot.slane %v1745, 5
  %v1748 = vor.u32 %v1744, %v1747
  %v1749 = vrot.slane %v1748, 4
  %v1751 = vshll.u32 %v1681, 16
  %v1753 = vrot.slane %v1751, 5
  %v1754 = vsel %vm57, %v1749, %v1753
  %v1756 = vshrl.u32 %v1674, 16
  %v1758 = vrot.slane %v1756, 4
  %v1759 = vshll.u32 %v1674, 16
  %v1761 = vrot.slane %v1759, 5
  %v1762 = vor.u32 %v1758, %v1761
  %v1763 = vrot.slane %v1762, 4
  %v1765 = vshll.u32 %v1682, 16
  %v1767 = vrot.slane %v1765, 5
  %v1768 = vsel %vm57, %v1763, %v1767
  %v1770 = vshrl.u32 %v1675, 16
  %v1772 = vrot.slane %v1770, 4
  %v1773 = vshll.u32 %v1675, 16
  %v1775 = vrot.slane %v1773, 5
  %v1776 = vor.u32 %v1772, %v1775
  %v1777 = vrot.slane %v1776, 4
  %v1779 = vshll.u32 %v1683, 16
  %v1781 = vrot.slane %v1779, 5
  %v1782 = vsel %vm57, %v1777, %v1781
  %v1784 = vshrl.u32 %v1676, 16
  %v1786 = vrot.slane %v1784, 4
  %v1787 = vshll.u32 %v1676, 16
  %v1789 = vrot.slane %v1787, 5
  %v1790 = vor.u32 %v1786, %v1789
  %v1791 = vrot.slane %v1790, 4
  %v1793 = vshll.u32 %v1684, 16
  %v1795 = vrot.slane %v1793, 5
  %v1796 = vsel %vm57, %v1791, %v1795
  %v1797 = vunpack.c.l.b16 %v1698
  %v1798 = vunpack.c.l.b16 %v1712
  %v1799 = vunpack.c.l.b16 %v1726
  %v1800 = vunpack.c.l.b16 %v1740
  %v1801 = vunpack.c.l.b16 %v1754
  %v1802 = vunpack.c.l.b16 %v1768
  %v1803 = vunpack.c.l.b16 %v1782
  %v1804 = vunpack.c.l.b16 %v1796
  %v1805 = vpack.c.b16 %v1798, %v1797
  %v1806 = vpack.c.b16 %v1800, %v1799
  %v1807 = vpack.c.b16 %v1802, %v1801
  %v1808 = vpack.c.b16 %v1804, %v1803
  %v1810 = vsel %vm291, %v1805, 0
  %v1813 = vsel %vm291, %v1806, 0
  %v1816 = vsel %vm291, %v1807, 0
  %v1819 = vsel %vm291, %v1808, 0
  %1821 = vmatprep.subr.bf16.mxu0 0
  %1822 = vmatpush1.bf16.msra.mxu0 0
  %1823 = vmatprep.subr.bf16.mxu0 0
  %1824 = vmatpush1.bf16.msra.mxu0 0
  %1825 = vmatprep.subr.bf16.mxu0 0
  %1826 = vmatpush1.bf16.msra.mxu0 0
  %1827 = vmatprep.subr.bf16.mxu0 %v309
  %1828 = vmatpush1.bf16.msra.mxu0 %v306
  %1829 = vmatprep.subr.bf16.mxu0 %v268
  %1830 = vmatpush1.bf16.msra.mxu0 %v267
  %1831 = vmatprep.subr.bf16.mxu0 %v264
  %1832 = vmatpush1.bf16.msra.mxu0 %v263
  %1833 = vmatprep.subr.bf16.mxu0 %v260
  %1834 = vmatpush1.bf16.msra.mxu0 %v259
  %1835 = vmatprep.subr.bf16.mxu0 %v256
  %1836 = vmatpush1.bf16.msra.mxu0 %v255
  %1837 = vmatprep.subr.bf16.mxu0 0
  %1838 = vmatpush2.bf16.msra.mxu0 0
  %1839 = vmatprep.subr.bf16.mxu0 0
  %1840 = vmatpush2.bf16.msra.mxu0 0
  %1841 = vmatprep.subr.bf16.mxu0 0
  %1842 = vmatpush2.bf16.msra.mxu0 0
  %1843 = vmatprep.subr.bf16.mxu0 0
  %1844 = vmatpush2.bf16.msra.mxu0 0
  %1845 = vmatprep.subr.bf16.mxu0 0
  %1846 = vmatpush2.bf16.msra.mxu0 0
  %1847 = vmatprep.subr.bf16.mxu0 0
  %1848 = vmatpush2.bf16.msra.mxu0 0
  %1849 = vmatprep.subr.bf16.mxu0 0
  %1850 = vmatpush2.bf16.msra.mxu0 0
  %1851 = vmatprep.subr.bf16.mxu0 0
  %1852 = vmatpush2.bf16.msra.mxu0 0
  %1853 = vmatprep.mubr.bf16.mxu0 0
  %1854 = vmatmul.mubr.bf16.gmra.mxu0 %v1810
  %v1855 = vpop.f32.mrf.mxu0
  %v1856 = vadd.f32 0.0, %v1855
  %v1857 = vpop.f32.mrf.mxu0
  %v1858 = vadd.f32 0.0, %v1857
  %v1859 = vpop.f32.mrf.mxu0
  %v1860 = vadd.f32 0.0, %v1859
  %v1861 = vpop.f32.mrf.mxu0
  %v1862 = vadd.f32 0.0, %v1861
  %1863 = vmatprep.mubr.bf16.mxu0 0
  %1864 = vmatmul.mubr.bf16.gmra.mxu0 %v1813
  %v1865 = vpop.f32.mrf.mxu0
  %v1866 = vadd.f32 0.0, %v1865
  %v1867 = vpop.f32.mrf.mxu0
  %v1868 = vadd.f32 0.0, %v1867
  %v1869 = vpop.f32.mrf.mxu0
  %v1870 = vadd.f32 0.0, %v1869
  %v1871 = vpop.f32.mrf.mxu0
  %v1872 = vadd.f32 0.0, %v1871
  %1873 = vmatprep.mubr.bf16.mxu0 0
  %1874 = vmatmul.mubr.bf16.gmra.mxu0 %v1816
  %v1875 = vpop.f32.mrf.mxu0
  %v1876 = vadd.f32 0.0, %v1875
  %v1877 = vpop.f32.mrf.mxu0
  %v1878 = vadd.f32 0.0, %v1877
  %v1879 = vpop.f32.mrf.mxu0
  %v1880 = vadd.f32 0.0, %v1879
  %v1881 = vpop.f32.mrf.mxu0
  %v1882 = vadd.f32 0.0, %v1881
  %1883 = vmatprep.mubr.bf16.mxu0 0
  %1884 = vmatmul.mubr.bf16.gmra.mxu0 %v1819
  %v1885 = vpop.f32.mrf.mxu0
  %v1886 = vadd.f32 0.0, %v1885
  %v1887 = vpop.f32.mrf.mxu0
  %v1888 = vadd.f32 0.0, %v1887
  %v1889 = vpop.f32.mrf.mxu0
  %v1890 = vadd.f32 0.0, %v1889
  %v1891 = vpop.f32.mrf.mxu0
  %v1892 = vadd.f32 0.0, %v1891
  %1893 = vdwg.mxu0
  %1894 = vmatprep.subr.bf16.mxu0 0
  %1895 = vmatpush1.bf16.msra.mxu0 0
  %1896 = vmatprep.subr.bf16.mxu0 0
  %1897 = vmatpush1.bf16.msra.mxu0 0
  %1898 = vmatprep.subr.bf16.mxu0 0
  %1899 = vmatpush1.bf16.msra.mxu0 0
  %1900 = vmatprep.subr.bf16.mxu0 %v315
  %1901 = vmatpush1.bf16.msra.mxu0 %v312
  %1902 = vmatprep.subr.bf16.mxu0 %v270
  %1903 = vmatpush1.bf16.msra.mxu0 %v269
  %1904 = vmatprep.subr.bf16.mxu0 %v266
  %1905 = vmatpush1.bf16.msra.mxu0 %v265
  %1906 = vmatprep.subr.bf16.mxu0 %v262
  %1907 = vmatpush1.bf16.msra.mxu0 %v261
  %1908 = vmatprep.subr.bf16.mxu0 %v258
  %1909 = vmatpush1.bf16.msra.mxu0 %v257
  %1910 = vmatprep.subr.bf16.mxu0 0
  %1911 = vmatpush2.bf16.msra.mxu0 0
  %1912 = vmatprep.subr.bf16.mxu0 0
  %1913 = vmatpush2.bf16.msra.mxu0 0
  %1914 = vmatprep.subr.bf16.mxu0 0
  %1915 = vmatpush2.bf16.msra.mxu0 0
  %1916 = vmatprep.subr.bf16.mxu0 0
  %1917 = vmatpush2.bf16.msra.mxu0 0
  %1918 = vmatprep.subr.bf16.mxu0 0
  %1919 = vmatpush2.bf16.msra.mxu0 0
  %1920 = vmatprep.subr.bf16.mxu0 0
  %1921 = vmatpush2.bf16.msra.mxu0 0
  %1922 = vmatprep.subr.bf16.mxu0 0
  %1923 = vmatpush2.bf16.msra.mxu0 0
  %1924 = vmatprep.subr.bf16.mxu0 0
  %1925 = vmatpush2.bf16.msra.mxu0 0
  %1926 = vmatprep.mubr.bf16.mxu0 0
  %1927 = vmatmul.mubr.bf16.gmra.mxu0 %v1810
  %v1928 = vpop.f32.mrf.mxu0
  %v1929 = vadd.f32 0.0, %v1928
  %v1930 = vpop.f32.mrf.mxu0
  %v1931 = vadd.f32 0.0, %v1930
  %v1932 = vpop.f32.mrf.mxu0
  %v1933 = vadd.f32 0.0, %v1932
  %v1934 = vpop.f32.mrf.mxu0
  %v1935 = vadd.f32 0.0, %v1934
  %1936 = vmatprep.mubr.bf16.mxu0 0
  %1937 = vmatmul.mubr.bf16.gmra.mxu0 %v1813
  %v1938 = vpop.f32.mrf.mxu0
  %v1939 = vadd.f32 0.0, %v1938
  %v1940 = vpop.f32.mrf.mxu0
  %v1941 = vadd.f32 0.0, %v1940
  %v1942 = vpop.f32.mrf.mxu0
  %v1943 = vadd.f32 0.0, %v1942
  %v1944 = vpop.f32.mrf.mxu0
  %v1945 = vadd.f32 0.0, %v1944
  %1946 = vmatprep.mubr.bf16.mxu0 0
  %1947 = vmatmul.mubr.bf16.gmra.mxu0 %v1816
  %v1948 = vpop.f32.mrf.mxu0
  %v1949 = vadd.f32 0.0, %v1948
  %v1950 = vpop.f32.mrf.mxu0
  %v1951 = vadd.f32 0.0, %v1950
  %v1952 = vpop.f32.mrf.mxu0
  %v1953 = vadd.f32 0.0, %v1952
  %v1954 = vpop.f32.mrf.mxu0
  %v1955 = vadd.f32 0.0, %v1954
  %1956 = vmatprep.mubr.bf16.mxu0 0
  %1957 = vmatmul.mubr.bf16.gmra.mxu0 %v1819
  %v1958 = vpop.f32.mrf.mxu0
  %v1959 = vadd.f32 0.0, %v1958
  %v1960 = vpop.f32.mrf.mxu0
  %v1961 = vadd.f32 0.0, %v1960
  %v1962 = vpop.f32.mrf.mxu0
  %v1963 = vadd.f32 0.0, %v1962
  %v1964 = vpop.f32.mrf.mxu0
  %v1965 = vadd.f32 0.0, %v1964
  %1966 = vdwg.mxu0
  %v1975 = vunpack.c.l.b16 %v1669
  %v1976 = vunpack.c.l.b16 %v1670
  %v1977 = vunpack.c.l.b16 %v1671
  %v1978 = vunpack.c.l.b16 %v1672
  %v1979 = vunpack.c.l.b16 %v1673
  %v1980 = vunpack.c.l.b16 %v1674
  %v1981 = vunpack.c.l.b16 %v1675
  %v1982 = vunpack.c.l.b16 %v1676
  %v1983 = vpack.c.b16 %v1976, %v1975
  %v1984 = vpack.c.b16 %v1978, %v1977
  %v1985 = vpack.c.b16 %v1980, %v1979
  %v1986 = vpack.c.b16 %v1982, %v1981
  %v1988 = vsel %vm291, %v1983, 0
  %v1991 = vsel %vm291, %v1984, 0
  %v1994 = vsel %vm291, %v1985, 0
  %v1997 = vsel %vm291, %v1986, 0
  %1999 = vmatprep.subr.bf16.mxu0 0
  %2000 = vmatpush1.bf16.msra.mxu0 0
  %2001 = vmatprep.subr.bf16.mxu0 0
  %2002 = vmatpush1.bf16.msra.mxu0 0
  %2003 = vmatprep.subr.bf16.mxu0 0
  %2004 = vmatpush1.bf16.msra.mxu0 0
  %2005 = vmatprep.subr.bf16.mxu0 %v589
  %2006 = vmatpush1.bf16.msra.mxu0 %v586
  %2007 = vmatprep.subr.bf16.mxu0 %v550
  %2008 = vmatpush1.bf16.msra.mxu0 %v549
  %2009 = vmatprep.subr.bf16.mxu0 %v546
  %2010 = vmatpush1.bf16.msra.mxu0 %v545
  %2011 = vmatprep.subr.bf16.mxu0 %v542
  %2012 = vmatpush1.bf16.msra.mxu0 %v541
  %2013 = vmatprep.subr.bf16.mxu0 %v538
  %2014 = vmatpush1.bf16.msra.mxu0 %v537
  %2015 = vmatprep.subr.bf16.mxu0 0
  %2016 = vmatpush2.bf16.msra.mxu0 0
  %2017 = vmatprep.subr.bf16.mxu0 0
  %2018 = vmatpush2.bf16.msra.mxu0 0
  %2019 = vmatprep.subr.bf16.mxu0 0
  %2020 = vmatpush2.bf16.msra.mxu0 0
  %2021 = vmatprep.subr.bf16.mxu0 0
  %2022 = vmatpush2.bf16.msra.mxu0 0
  %2023 = vmatprep.subr.bf16.mxu0 0
  %2024 = vmatpush2.bf16.msra.mxu0 0
  %2025 = vmatprep.subr.bf16.mxu0 0
  %2026 = vmatpush2.bf16.msra.mxu0 0
  %2027 = vmatprep.subr.bf16.mxu0 0
  %2028 = vmatpush2.bf16.msra.mxu0 0
  %2029 = vmatprep.subr.bf16.mxu0 0
  %2030 = vmatpush2.bf16.msra.mxu0 0
  %2031 = vmatprep.mubr.bf16.mxu0 0
  %2032 = vmatmul.mubr.bf16.gmra.mxu0 %v1988
  %v2033 = vpop.f32.mrf.mxu0
  %v2034 = vadd.f32 %v1856, %v2033
  %v2035 = vpop.f32.mrf.mxu0
  %v2036 = vadd.f32 %v1858, %v2035
  %v2037 = vpop.f32.mrf.mxu0
  %v2038 = vadd.f32 %v1860, %v2037
  %v2039 = vpop.f32.mrf.mxu0
  %v2040 = vadd.f32 %v1862, %v2039
  %2041 = vmatprep.mubr.bf16.mxu0 0
  %2042 = vmatmul.mubr.bf16.gmra.mxu0 %v1991
  %v2043 = vpop.f32.mrf.mxu0
  %v2044 = vadd.f32 %v1866, %v2043
  %v2045 = vpop.f32.mrf.mxu0
  %v2046 = vadd.f32 %v1868, %v2045
  %v2047 = vpop.f32.mrf.mxu0
  %v2048 = vadd.f32 %v1870, %v2047
  %v2049 = vpop.f32.mrf.mxu0
  %v2050 = vadd.f32 %v1872, %v2049
  %2051 = vmatprep.mubr.bf16.mxu0 0
  %2052 = vmatmul.mubr.bf16.gmra.mxu0 %v1994
  %v2053 = vpop.f32.mrf.mxu0
  %v2054 = vadd.f32 %v1876, %v2053
  %v2055 = vpop.f32.mrf.mxu0
  %v2056 = vadd.f32 %v1878, %v2055
  %v2057 = vpop.f32.mrf.mxu0
  %v2058 = vadd.f32 %v1880, %v2057
  %v2059 = vpop.f32.mrf.mxu0
  %v2060 = vadd.f32 %v1882, %v2059
  %2061 = vmatprep.mubr.bf16.mxu0 0
  %2062 = vmatmul.mubr.bf16.gmra.mxu0 %v1997
  %v2063 = vpop.f32.mrf.mxu0
  %v2064 = vadd.f32 %v1886, %v2063
  %v2065 = vpop.f32.mrf.mxu0
  %v2066 = vadd.f32 %v1888, %v2065
  %v2067 = vpop.f32.mrf.mxu0
  %v2068 = vadd.f32 %v1890, %v2067
  %v2069 = vpop.f32.mrf.mxu0
  %v2070 = vadd.f32 %v1892, %v2069
  %2071 = vdwg.mxu0
  %2072 = vmatprep.subr.bf16.mxu0 0
  %2073 = vmatpush1.bf16.msra.mxu0 0
  %2074 = vmatprep.subr.bf16.mxu0 0
  %2075 = vmatpush1.bf16.msra.mxu0 0
  %2076 = vmatprep.subr.bf16.mxu0 0
  %2077 = vmatpush1.bf16.msra.mxu0 0
  %2078 = vmatprep.subr.bf16.mxu0 %v595
  %2079 = vmatpush1.bf16.msra.mxu0 %v592
  %2080 = vmatprep.subr.bf16.mxu0 %v552
  %2081 = vmatpush1.bf16.msra.mxu0 %v551
  %2082 = vmatprep.subr.bf16.mxu0 %v548
  %2083 = vmatpush1.bf16.msra.mxu0 %v547
  %2084 = vmatprep.subr.bf16.mxu0 %v544
  %2085 = vmatpush1.bf16.msra.mxu0 %v543
  %2086 = vmatprep.subr.bf16.mxu0 %v540
  %2087 = vmatpush1.bf16.msra.mxu0 %v539
  %2088 = vmatprep.subr.bf16.mxu0 0
  %2089 = vmatpush2.bf16.msra.mxu0 0
  %2090 = vmatprep.subr.bf16.mxu0 0
  %2091 = vmatpush2.bf16.msra.mxu0 0
  %2092 = vmatprep.subr.bf16.mxu0 0
  %2093 = vmatpush2.bf16.msra.mxu0 0
  %2094 = vmatprep.subr.bf16.mxu0 0
  %2095 = vmatpush2.bf16.msra.mxu0 0
  %2096 = vmatprep.subr.bf16.mxu0 0
  %2097 = vmatpush2.bf16.msra.mxu0 0
  %2098 = vmatprep.subr.bf16.mxu0 0
  %2099 = vmatpush2.bf16.msra.mxu0 0
  %2100 = vmatprep.subr.bf16.mxu0 0
  %2101 = vmatpush2.bf16.msra.mxu0 0
  %2102 = vmatprep.subr.bf16.mxu0 0
  %2103 = vmatpush2.bf16.msra.mxu0 0
  %2104 = vmatprep.mubr.bf16.mxu0 0
  %2105 = vmatmul.mubr.bf16.gmra.mxu0 %v1988
  %v2106 = vpop.f32.mrf.mxu0
  %v2107 = vadd.f32 %v1929, %v2106
  %v2108 = vpop.f32.mrf.mxu0
  %v2109 = vadd.f32 %v1931, %v2108
  %v2110 = vpop.f32.mrf.mxu0
  %v2111 = vadd.f32 %v1933, %v2110
  %v2112 = vpop.f32.mrf.mxu0
  %v2113 = vadd.f32 %v1935, %v2112
  %2114 = vmatprep.mubr.bf16.mxu0 0
  %2115 = vmatmul.mubr.bf16.gmra.mxu0 %v1991
  %v2116 = vpop.f32.mrf.mxu0
  %v2117 = vadd.f32 %v1939, %v2116
  %v2118 = vpop.f32.mrf.mxu0
  %v2119 = vadd.f32 %v1941, %v2118
  %v2120 = vpop.f32.mrf.mxu0
  %v2121 = vadd.f32 %v1943, %v2120
  %v2122 = vpop.f32.mrf.mxu0
  %v2123 = vadd.f32 %v1945, %v2122
  %2124 = vmatprep.mubr.bf16.mxu0 0
  %2125 = vmatmul.mubr.bf16.gmra.mxu0 %v1994
  %v2126 = vpop.f32.mrf.mxu0
  %v2127 = vadd.f32 %v1949, %v2126
  %v2128 = vpop.f32.mrf.mxu0
  %v2129 = vadd.f32 %v1951, %v2128
  %v2130 = vpop.f32.mrf.mxu0
  %v2131 = vadd.f32 %v1953, %v2130
  %v2132 = vpop.f32.mrf.mxu0
  %v2133 = vadd.f32 %v1955, %v2132
  %2134 = vmatprep.mubr.bf16.mxu0 0
  %2135 = vmatmul.mubr.bf16.gmra.mxu0 %v1997
  %v2136 = vpop.f32.mrf.mxu0
  %v2137 = vadd.f32 %v1959, %v2136
  %v2138 = vpop.f32.mrf.mxu0
  %v2139 = vadd.f32 %v1961, %v2138
  %v2140 = vpop.f32.mrf.mxu0
  %v2141 = vadd.f32 %v1963, %v2140
  %v2142 = vpop.f32.mrf.mxu0
  %v2143 = vadd.f32 %v1965, %v2142
  %2144 = vdwg.mxu0
  %v2145 = vld [vmem:[%s0 + $0x4] sm:$0xe]
  %v2146 = vld [vmem:[%s0 + $0x10] sm:$0xe]
  %v2147 = vld [vmem:[%s0 + $0x1c] sm:$0xe]
  %v2148 = vld [vmem:[%s0 + $0x28] sm:$0xe]
  %v2149 = vld [vmem:[%s0 + $0x34] sm:$0xe]
  %v2150 = vld [vmem:[%s0 + $0x40] sm:$0xe]
  %v2151 = vld [vmem:[%s0 + $0x4c] sm:$0xe]
  %v2152 = vld [vmem:[%s0 + $0x58] sm:$0xe]
  %v2169 = vrot.slane %v2145, 5
  %v2170 = vrot.slane %v2169, 4
  %v2171 = vrot.slane %v1677, 5
  %v2172 = vsel %vm769, %v2170, %v2171
  %v2173 = vrot.slane %v2146, 5
  %v2174 = vrot.slane %v2173, 4
  %v2175 = vrot.slane %v1678, 5
  %v2176 = vsel %vm769, %v2174, %v2175
  %v2177 = vrot.slane %v2147, 5
  %v2178 = vrot.slane %v2177, 4
  %v2179 = vrot.slane %v1679, 5
  %v2180 = vsel %vm769, %v2178, %v2179
  %v2181 = vrot.slane %v2148, 5
  %v2182 = vrot.slane %v2181, 4
  %v2183 = vrot.slane %v1680, 5
  %v2184 = vsel %vm769, %v2182, %v2183
  %v2185 = vrot.slane %v2149, 5
  %v2186 = vrot.slane %v2185, 4
  %v2187 = vrot.slane %v1681, 5
  %v2188 = vsel %vm769, %v2186, %v2187
  %v2189 = vrot.slane %v2150, 5
  %v2190 = vrot.slane %v2189, 4
  %v2191 = vrot.slane %v1682, 5
  %v2192 = vsel %vm769, %v2190, %v2191
  %v2193 = vrot.slane %v2151, 5
  %v2194 = vrot.slane %v2193, 4
  %v2195 = vrot.slane %v1683, 5
  %v2196 = vsel %vm769, %v2194, %v2195
  %v2197 = vrot.slane %v2152, 5
  %v2198 = vrot.slane %v2197, 4
  %v2199 = vrot.slane %v1684, 5
  %v2200 = vsel %vm769, %v2198, %v2199
  %v2201 = vunpack.c.l.b16 %v2172
  %v2202 = vunpack.c.l.b16 %v2176
  %v2203 = vunpack.c.l.b16 %v2180
  %v2204 = vunpack.c.l.b16 %v2184
  %v2205 = vunpack.c.l.b16 %v2188
  %v2206 = vunpack.c.l.b16 %v2192
  %v2207 = vunpack.c.l.b16 %v2196
  %v2208 = vunpack.c.l.b16 %v2200
  %v2209 = vpack.c.b16 %v2202, %v2201
  %v2210 = vpack.c.b16 %v2204, %v2203
  %v2211 = vpack.c.b16 %v2206, %v2205
  %v2212 = vpack.c.b16 %v2208, %v2207
  %v2214 = vsel %vm291, %v2209, 0
  %v2217 = vsel %vm291, %v2210, 0
  %v2220 = vsel %vm291, %v2211, 0
  %v2223 = vsel %vm291, %v2212, 0
  %2225 = vmatprep.subr.bf16.mxu0 0
  %2226 = vmatpush1.bf16.msra.mxu0 0
  %2227 = vmatprep.subr.bf16.mxu0 0
  %2228 = vmatpush1.bf16.msra.mxu0 0
  %2229 = vmatprep.subr.bf16.mxu0 0
  %2230 = vmatpush1.bf16.msra.mxu0 0
  %2231 = vmatprep.subr.bf16.mxu0 %v939
  %2232 = vmatpush1.bf16.msra.mxu0 %v936
  %2233 = vmatprep.subr.bf16.mxu0 %v900
  %2234 = vmatpush1.bf16.msra.mxu0 %v899
  %2235 = vmatprep.subr.bf16.mxu0 %v896
  %2236 = vmatpush1.bf16.msra.mxu0 %v895
  %2237 = vmatprep.subr.bf16.mxu0 %v892
  %2238 = vmatpush1.bf16.msra.mxu0 %v891
  %2239 = vmatprep.subr.bf16.mxu0 %v888
  %2240 = vmatpush1.bf16.msra.mxu0 %v887
  %2241 = vmatprep.subr.bf16.mxu0 0
  %2242 = vmatpush2.bf16.msra.mxu0 0
  %2243 = vmatprep.subr.bf16.mxu0 0
  %2244 = vmatpush2.bf16.msra.mxu0 0
  %2245 = vmatprep.subr.bf16.mxu0 0
  %2246 = vmatpush2.bf16.msra.mxu0 0
  %2247 = vmatprep.subr.bf16.mxu0 0
  %2248 = vmatpush2.bf16.msra.mxu0 0
  %2249 = vmatprep.subr.bf16.mxu0 0
  %2250 = vmatpush2.bf16.msra.mxu0 0
  %2251 = vmatprep.subr.bf16.mxu0 0
  %2252 = vmatpush2.bf16.msra.mxu0 0
  %2253 = vmatprep.subr.bf16.mxu0 0
  %2254 = vmatpush2.bf16.msra.mxu0 0
  %2255 = vmatprep.subr.bf16.mxu0 0
  %2256 = vmatpush2.bf16.msra.mxu0 0
  %2257 = vmatprep.mubr.bf16.mxu0 0
  %2258 = vmatmul.mubr.bf16.gmra.mxu0 %v2214
  %v2259 = vpop.f32.mrf.mxu0
  %v2260 = vadd.f32 0.0, %v2259
  %v2261 = vpop.f32.mrf.mxu0
  %v2262 = vadd.f32 0.0, %v2261
  %v2263 = vpop.f32.mrf.mxu0
  %v2264 = vadd.f32 0.0, %v2263
  %v2265 = vpop.f32.mrf.mxu0
  %v2266 = vadd.f32 0.0, %v2265
  %2267 = vmatprep.mubr.bf16.mxu0 0
  %2268 = vmatmul.mubr.bf16.gmra.mxu0 %v2217
  %v2269 = vpop.f32.mrf.mxu0
  %v2270 = vadd.f32 0.0, %v2269
  %v2271 = vpop.f32.mrf.mxu0
  %v2272 = vadd.f32 0.0, %v2271
  %v2273 = vpop.f32.mrf.mxu0
  %v2274 = vadd.f32 0.0, %v2273
  %v2275 = vpop.f32.mrf.mxu0
  %v2276 = vadd.f32 0.0, %v2275
  %2277 = vmatprep.mubr.bf16.mxu0 0
  %2278 = vmatmul.mubr.bf16.gmra.mxu0 %v2220
  %v2279 = vpop.f32.mrf.mxu0
  %v2280 = vadd.f32 0.0, %v2279
  %v2281 = vpop.f32.mrf.mxu0
  %v2282 = vadd.f32 0.0, %v2281
  %v2283 = vpop.f32.mrf.mxu0
  %v2284 = vadd.f32 0.0, %v2283
  %v2285 = vpop.f32.mrf.mxu0
  %v2286 = vadd.f32 0.0, %v2285
  %2287 = vmatprep.mubr.bf16.mxu0 0
  %2288 = vmatmul.mubr.bf16.gmra.mxu0 %v2223
  %v2289 = vpop.f32.mrf.mxu0
  %v2290 = vadd.f32 0.0, %v2289
  %v2291 = vpop.f32.mrf.mxu0
  %v2292 = vadd.f32 0.0, %v2291
  %v2293 = vpop.f32.mrf.mxu0
  %v2294 = vadd.f32 0.0, %v2293
  %v2295 = vpop.f32.mrf.mxu0
  %v2296 = vadd.f32 0.0, %v2295
  %2297 = vdwg.mxu0
  %2298 = vmatprep.subr.bf16.mxu0 0
  %2299 = vmatpush1.bf16.msra.mxu0 0
  %2300 = vmatprep.subr.bf16.mxu0 0
  %2301 = vmatpush1.bf16.msra.mxu0 0
  %2302 = vmatprep.subr.bf16.mxu0 0
  %2303 = vmatpush1.bf16.msra.mxu0 0
  %2304 = vmatprep.subr.bf16.mxu0 %v945
  %2305 = vmatpush1.bf16.msra.mxu0 %v942
  %2306 = vmatprep.subr.bf16.mxu0 %v902
  %2307 = vmatpush1.bf16.msra.mxu0 %v901
  %2308 = vmatprep.subr.bf16.mxu0 %v898
  %2309 = vmatpush1.bf16.msra.mxu0 %v897
  %2310 = vmatprep.subr.bf16.mxu0 %v894
  %2311 = vmatpush1.bf16.msra.mxu0 %v893
  %2312 = vmatprep.subr.bf16.mxu0 %v890
  %2313 = vmatpush1.bf16.msra.mxu0 %v889
  %2314 = vmatprep.subr.bf16.mxu0 0
  %2315 = vmatpush2.bf16.msra.mxu0 0
  %2316 = vmatprep.subr.bf16.mxu0 0
  %2317 = vmatpush2.bf16.msra.mxu0 0
  %2318 = vmatprep.subr.bf16.mxu0 0
  %2319 = vmatpush2.bf16.msra.mxu0 0
  %2320 = vmatprep.subr.bf16.mxu0 0
  %2321 = vmatpush2.bf16.msra.mxu0 0
  %2322 = vmatprep.subr.bf16.mxu0 0
  %2323 = vmatpush2.bf16.msra.mxu0 0
  %2324 = vmatprep.subr.bf16.mxu0 0
  %2325 = vmatpush2.bf16.msra.mxu0 0
  %2326 = vmatprep.subr.bf16.mxu0 0
  %2327 = vmatpush2.bf16.msra.mxu0 0
  %2328 = vmatprep.subr.bf16.mxu0 0
  %2329 = vmatpush2.bf16.msra.mxu0 0
  %2330 = vmatprep.mubr.bf16.mxu0 0
  %2331 = vmatmul.mubr.bf16.gmra.mxu0 %v2214
  %v2332 = vpop.f32.mrf.mxu0
  %v2333 = vadd.f32 0.0, %v2332
  %v2334 = vpop.f32.mrf.mxu0
  %v2335 = vadd.f32 0.0, %v2334
  %v2336 = vpop.f32.mrf.mxu0
  %v2337 = vadd.f32 0.0, %v2336
  %v2338 = vpop.f32.mrf.mxu0
  %v2339 = vadd.f32 0.0, %v2338
  %2340 = vmatprep.mubr.bf16.mxu0 0
  %2341 = vmatmul.mubr.bf16.gmra.mxu0 %v2217
  %v2342 = vpop.f32.mrf.mxu0
  %v2343 = vadd.f32 0.0, %v2342
  %v2344 = vpop.f32.mrf.mxu0
  %v2345 = vadd.f32 0.0, %v2344
  %v2346 = vpop.f32.mrf.mxu0
  %v2347 = vadd.f32 0.0, %v2346
  %v2348 = vpop.f32.mrf.mxu0
  %v2349 = vadd.f32 0.0, %v2348
  %2350 = vmatprep.mubr.bf16.mxu0 0
  %2351 = vmatmul.mubr.bf16.gmra.mxu0 %v2220
  %v2352 = vpop.f32.mrf.mxu0
  %v2353 = vadd.f32 0.0, %v2352
  %v2354 = vpop.f32.mrf.mxu0
  %v2355 = vadd.f32 0.0, %v2354
  %v2356 = vpop.f32.mrf.mxu0
  %v2357 = vadd.f32 0.0, %v2356
  %v2358 = vpop.f32.mrf.mxu0
  %v2359 = vadd.f32 0.0, %v2358
  %2360 = vmatprep.mubr.bf16.mxu0 0
  %2361 = vmatmul.mubr.bf16.gmra.mxu0 %v2223
  %v2362 = vpop.f32.mrf.mxu0
  %v2363 = vadd.f32 0.0, %v2362
  %v2364 = vpop.f32.mrf.mxu0
  %v2365 = vadd.f32 0.0, %v2364
  %v2366 = vpop.f32.mrf.mxu0
  %v2367 = vadd.f32 0.0, %v2366
  %v2368 = vpop.f32.mrf.mxu0
  %v2369 = vadd.f32 0.0, %v2368
  %2370 = vdwg.mxu0
  %v2371 = vadd.f32 %v2034, %v2260
  %v2372 = vadd.f32 %v2036, %v2262
  %v2373 = vadd.f32 %v2107, %v2333
  %v2374 = vadd.f32 %v2109, %v2335
  %v2375 = vadd.f32 %v2038, %v2264
  %v2376 = vadd.f32 %v2040, %v2266
  %v2377 = vadd.f32 %v2111, %v2337
  %v2378 = vadd.f32 %v2113, %v2339
  %v2379 = vadd.f32 %v2044, %v2270
  %v2380 = vadd.f32 %v2046, %v2272
  %v2381 = vadd.f32 %v2117, %v2343
  %v2382 = vadd.f32 %v2119, %v2345
  %v2383 = vadd.f32 %v2048, %v2274
  %v2384 = vadd.f32 %v2050, %v2276
  %v2385 = vadd.f32 %v2121, %v2347
  %v2386 = vadd.f32 %v2123, %v2349
  %v2387 = vadd.f32 %v2054, %v2280
  %v2388 = vadd.f32 %v2056, %v2282
  %v2389 = vadd.f32 %v2127, %v2353
  %v2390 = vadd.f32 %v2129, %v2355
  %v2391 = vadd.f32 %v2058, %v2284
  %v2392 = vadd.f32 %v2060, %v2286
  %v2393 = vadd.f32 %v2131, %v2357
  %v2394 = vadd.f32 %v2133, %v2359
  %v2395 = vadd.f32 %v2064, %v2290
  %v2396 = vadd.f32 %v2066, %v2292
  %v2397 = vadd.f32 %v2137, %v2363
  %v2398 = vadd.f32 %v2139, %v2365
  %v2399 = vadd.f32 %v2068, %v2294
  %v2400 = vadd.f32 %v2070, %v2296
  %v2401 = vadd.f32 %v2141, %v2367
  %v2402 = vadd.f32 %v2143, %v2369
  %v2403 = vadd.f32 %v2371, %v1130
  %v2404 = vadd.f32 %v2372, %v1134
  %v2405 = vadd.f32 %v2373, %v1138
  %v2406 = vadd.f32 %v2374, %v1142
  %v2407 = vadd.f32 %v2375, %v1130
  %v2408 = vadd.f32 %v2376, %v1134
  %v2409 = vadd.f32 %v2377, %v1138
  %v2410 = vadd.f32 %v2378, %v1142
  %v2411 = vadd.f32 %v2379, %v1130
  %v2412 = vadd.f32 %v2380, %v1134
  %v2413 = vadd.f32 %v2381, %v1138
  %v2414 = vadd.f32 %v2382, %v1142
  %v2415 = vadd.f32 %v2383, %v1130
  %v2416 = vadd.f32 %v2384, %v1134
  %v2417 = vadd.f32 %v2385, %v1138
  %v2418 = vadd.f32 %v2386, %v1142
  %v2419 = vadd.f32 %v2387, %v1130
  %v2420 = vadd.f32 %v2388, %v1134
  %v2421 = vadd.f32 %v2389, %v1138
  %v2422 = vadd.f32 %v2390, %v1142
  %v2423 = vadd.f32 %v2391, %v1130
  %v2424 = vadd.f32 %v2392, %v1134
  %v2425 = vadd.f32 %v2393, %v1138
  %v2426 = vadd.f32 %v2394, %v1142
  %v2427 = vadd.f32 %v2395, %v1130
  %v2428 = vadd.f32 %v2396, %v1134
  %v2429 = vadd.f32 %v2397, %v1138
  %v2430 = vadd.f32 %v2398, %v1142
  %v2431 = vadd.f32 %v2399, %v1130
  %v2432 = vadd.f32 %v2400, %v1134
  %v2433 = vadd.f32 %v2401, %v1138
  %v2434 = vadd.f32 %v2402, %v1142
  %v2435 = vmax.f32 %v2403, 0.0
  %v2436 = vmax.f32 %v2404, 0.0
  %v2437 = vmax.f32 %v2405, 0.0
  %v2438 = vmax.f32 %v2406, 0.0
  %v2439 = vmax.f32 %v2407, 0.0
  %v2440 = vmax.f32 %v2408, 0.0
  %v2441 = vmax.f32 %v2409, 0.0
  %v2442 = vmax.f32 %v2410, 0.0
  %v2443 = vmax.f32 %v2411, 0.0
  %v2444 = vmax.f32 %v2412, 0.0
  %v2445 = vmax.f32 %v2413, 0.0
  %v2446 = vmax.f32 %v2414, 0.0
  %v2447 = vmax.f32 %v2415, 0.0
  %v2448 = vmax.f32 %v2416, 0.0
  %v2449 = vmax.f32 %v2417, 0.0
  %v2450 = vmax.f32 %v2418, 0.0
  %v2451 = vmax.f32 %v2419, 0.0
  %v2452 = vmax.f32 %v2420, 0.0
  %v2453 = vmax.f32 %v2421, 0.0
  %v2454 = vmax.f32 %v2422, 0.0
  %v2455 = vmax.f32 %v2423, 0.0
  %v2456 = vmax.f32 %v2424, 0.0
  %v2457 = vmax.f32 %v2425, 0.0
  %v2458 = vmax.f32 %v2426, 0.0
  %v2459 = vmax.f32 %v2427, 0.0
  %v2460 = vmax.f32 %v2428, 0.0
  %v2461 = vmax.f32 %v2429, 0.0
  %v2462 = vmax.f32 %v2430, 0.0
  %v2463 = vmax.f32 %v2431, 0.0
  %v2464 = vmax.f32 %v2432, 0.0
  %v2465 = vmax.f32 %v2433, 0.0
  %v2466 = vmax.f32 %v2434, 0.0
  %v2467 = vpack.c.bf16 %v2439, %v2435
  %v2468 = vpack.c.bf16 %v2440, %v2436
  %v2469 = vpack.c.bf16 %v2441, %v2437
  %v2470 = vpack.c.bf16 %v2442, %v2438
  %v2471 = vpack.c.bf16 %v2447, %v2443
  %v2472 = vpack.c.bf16 %v2448, %v2444
  %v2473 = vpack.c.bf16 %v2449, %v2445
  %v2474 = vpack.c.bf16 %v2450, %v2446
  %v2475 = vpack.c.bf16 %v2455, %v2451
  %v2476 = vpack.c.bf16 %v2456, %v2452
  %v2477 = vpack.c.bf16 %v2457, %v2453
  %v2478 = vpack.c.bf16 %v2458, %v2454
  %v2479 = vpack.c.bf16 %v2463, %v2459
  %v2480 = vpack.c.bf16 %v2464, %v2460
  %v2481 = vpack.c.bf16 %v2465, %v2461
  %v2482 = vpack.c.bf16 %v2466, %v2462
  %2483 = vmatprep.subr.bf16.mxu0 0
  %2484 = vmatpush1.bf16.msra.mxu0 %v1426
  %2485 = vmatprep.subr.bf16.mxu0 0
  %2486 = vmatpush1.bf16.msra.mxu0 %v1425
  %2487 = vmatprep.subr.bf16.mxu0 0
  %2488 = vmatpush1.bf16.msra.mxu0 %v1424
  %2489 = vmatprep.subr.bf16.mxu0 0
  %2490 = vmatpush1.bf16.msra.mxu0 %v1423
  %2491 = vmatprep.subr.bf16.mxu0 0
  %2492 = vmatpush1.bf16.msra.mxu0 %v1422
  %2493 = vmatprep.subr.bf16.mxu0 0
  %2494 = vmatpush1.bf16.msra.mxu0 %v1421
  %2495 = vmatprep.subr.bf16.mxu0 0
  %2496 = vmatpush1.bf16.msra.mxu0 %v1420
  %2497 = vmatprep.subr.bf16.mxu0 0
  %2498 = vmatpush1.bf16.msra.mxu0 %v1419
  %2499 = vmatprep.subr.bf16.mxu0 0
  %2500 = vmatpush2.bf16.msra.mxu0 %v1434
  %2501 = vmatprep.subr.bf16.mxu0 0
  %2502 = vmatpush2.bf16.msra.mxu0 %v1433
  %2503 = vmatprep.subr.bf16.mxu0 0
  %2504 = vmatpush2.bf16.msra.mxu0 %v1432
  %2505 = vmatprep.subr.bf16.mxu0 0
  %2506 = vmatpush2.bf16.msra.mxu0 %v1431
  %2507 = vmatprep.subr.bf16.mxu0 0
  %2508 = vmatpush2.bf16.msra.mxu0 %v1430
  %2509 = vmatprep.subr.bf16.mxu0 0
  %2510 = vmatpush2.bf16.msra.mxu0 %v1429
  %2511 = vmatprep.subr.bf16.mxu0 0
  %2512 = vmatpush2.bf16.msra.mxu0 %v1428
  %2513 = vmatprep.subr.bf16.mxu0 0
  %2514 = vmatpush2.bf16.msra.mxu0 %v1427
  %2515 = vmatprep.mubr.bf16.mxu0 %v2468
  %2516 = vmatmul.mubr.bf16.gmra.mxu0 %v2467
  %v2517 = vpop.f32.mrf.mxu0
  %v2518 = vadd.f32 0.0, %v2517
  %v2519 = vpop.f32.mrf.mxu0
  %v2520 = vpop.f32.mrf.mxu0
  %v2521 = vadd.f32 0.0, %v2520
  %v2522 = vpop.f32.mrf.mxu0
  %2523 = vmatprep.mubr.bf16.mxu0 %v2472
  %2524 = vmatmul.mubr.bf16.gmra.mxu0 %v2471
  %v2525 = vpop.f32.mrf.mxu0
  %v2526 = vadd.f32 0.0, %v2525
  %v2527 = vpop.f32.mrf.mxu0
  %v2528 = vpop.f32.mrf.mxu0
  %v2529 = vadd.f32 0.0, %v2528
  %v2530 = vpop.f32.mrf.mxu0
  %2531 = vmatprep.mubr.bf16.mxu0 %v2476
  %2532 = vmatmul.mubr.bf16.gmra.mxu0 %v2475
  %v2533 = vpop.f32.mrf.mxu0
  %v2534 = vadd.f32 0.0, %v2533
  %v2535 = vpop.f32.mrf.mxu0
  %v2536 = vpop.f32.mrf.mxu0
  %v2537 = vadd.f32 0.0, %v2536
  %v2538 = vpop.f32.mrf.mxu0
  %2539 = vmatprep.mubr.bf16.mxu0 %v2480
  %2540 = vmatmul.mubr.bf16.gmra.mxu0 %v2479
  %v2541 = vpop.f32.mrf.mxu0
  %v2542 = vadd.f32 0.0, %v2541
  %v2543 = vpop.f32.mrf.mxu0
  %v2544 = vpop.f32.mrf.mxu0
  %v2545 = vadd.f32 0.0, %v2544
  %v2546 = vpop.f32.mrf.mxu0
  %2547 = vdwg.mxu0
  %2548 = vmatprep.subr.bf16.mxu0 0
  %2549 = vmatpush1.bf16.msra.mxu0 %v1442
  %2550 = vmatprep.subr.bf16.mxu0 0
  %2551 = vmatpush1.bf16.msra.mxu0 %v1441
  %2552 = vmatprep.subr.bf16.mxu0 0
  %2553 = vmatpush1.bf16.msra.mxu0 %v1440
  %2554 = vmatprep.subr.bf16.mxu0 0
  %2555 = vmatpush1.bf16.msra.mxu0 %v1439
  %2556 = vmatprep.subr.bf16.mxu0 0
  %2557 = vmatpush1.bf16.msra.mxu0 %v1438
  %2558 = vmatprep.subr.bf16.mxu0 0
  %2559 = vmatpush1.bf16.msra.mxu0 %v1437
  %2560 = vmatprep.subr.bf16.mxu0 0
  %2561 = vmatpush1.bf16.msra.mxu0 %v1436
  %2562 = vmatprep.subr.bf16.mxu0 0
  %2563 = vmatpush1.bf16.msra.mxu0 %v1435
  %2564 = vmatprep.subr.bf16.mxu0 0
  %2565 = vmatpush2.bf16.msra.mxu0 %v1450
  %2566 = vmatprep.subr.bf16.mxu0 0
  %2567 = vmatpush2.bf16.msra.mxu0 %v1449
  %2568 = vmatprep.subr.bf16.mxu0 0
  %2569 = vmatpush2.bf16.msra.mxu0 %v1448
  %2570 = vmatprep.subr.bf16.mxu0 0
  %2571 = vmatpush2.bf16.msra.mxu0 %v1447
  %2572 = vmatprep.subr.bf16.mxu0 0
  %2573 = vmatpush2.bf16.msra.mxu0 %v1446
  %2574 = vmatprep.subr.bf16.mxu0 0
  %2575 = vmatpush2.bf16.msra.mxu0 %v1445
  %2576 = vmatprep.subr.bf16.mxu0 0
  %2577 = vmatpush2.bf16.msra.mxu0 %v1444
  %2578 = vmatprep.subr.bf16.mxu0 0
  %2579 = vmatpush2.bf16.msra.mxu0 %v1443
  %2580 = vmatprep.mubr.bf16.mxu0 %v2470
  %2581 = vmatmul.mubr.bf16.gmra.mxu0 %v2469
  %v2582 = vpop.f32.mrf.mxu0
  %v2583 = vadd.f32 %v2518, %v2582
  %v2584 = vpop.f32.mrf.mxu0
  %v2585 = vpop.f32.mrf.mxu0
  %v2586 = vadd.f32 %v2521, %v2585
  %v2587 = vpop.f32.mrf.mxu0
  %2588 = vmatprep.mubr.bf16.mxu0 %v2474
  %2589 = vmatmul.mubr.bf16.gmra.mxu0 %v2473
  %v2590 = vpop.f32.mrf.mxu0
  %v2591 = vadd.f32 %v2526, %v2590
  %v2592 = vpop.f32.mrf.mxu0
  %v2593 = vpop.f32.mrf.mxu0
  %v2594 = vadd.f32 %v2529, %v2593
  %v2595 = vpop.f32.mrf.mxu0
  %2596 = vmatprep.mubr.bf16.mxu0 %v2478
  %2597 = vmatmul.mubr.bf16.gmra.mxu0 %v2477
  %v2598 = vpop.f32.mrf.mxu0
  %v2599 = vadd.f32 %v2534, %v2598
  %v2600 = vpop.f32.mrf.mxu0
  %v2601 = vpop.f32.mrf.mxu0
  %v2602 = vadd.f32 %v2537, %v2601
  %v2603 = vpop.f32.mrf.mxu0
  %2604 = vmatprep.mubr.bf16.mxu0 %v2482
  %2605 = vmatmul.mubr.bf16.gmra.mxu0 %v2481
  %v2606 = vpop.f32.mrf.mxu0
  %v2607 = vadd.f32 %v2542, %v2606
  %v2608 = vpop.f32.mrf.mxu0
  %v2609 = vpop.f32.mrf.mxu0
  %v2610 = vadd.f32 %v2545, %v2609
  %v2611 = vpop.f32.mrf.mxu0
  %2612 = vdwg.mxu0
  %v2613 = vrot.slane %v2583, 4
  %v2614 = vadd.f32 %v2583, %v2613
  %v2615 = vrot.slane %v2614, 2
  %v2616 = vadd.f32 %v2614, %v2615
  %v2617 = vrot.slane %v2616, 1
  %v2618 = vadd.f32 %v2616, %v2617
  %v2619 = vrot.slane %v2586, 4
  %v2620 = vadd.f32 %v2586, %v2619
  %v2621 = vrot.slane %v2620, 2
  %v2622 = vadd.f32 %v2620, %v2621
  %v2623 = vrot.slane %v2622, 1
  %v2624 = vadd.f32 %v2622, %v2623
  %v2625 = vrot.slane %v2591, 4
  %v2626 = vadd.f32 %v2591, %v2625
  %v2627 = vrot.slane %v2626, 2
  %v2628 = vadd.f32 %v2626, %v2627
  %v2629 = vrot.slane %v2628, 1
  %v2630 = vadd.f32 %v2628, %v2629
  %v2631 = vrot.slane %v2594, 4
  %v2632 = vadd.f32 %v2594, %v2631
  %v2633 = vrot.slane %v2632, 2
  %v2634 = vadd.f32 %v2632, %v2633
  %v2635 = vrot.slane %v2634, 1
  %v2636 = vadd.f32 %v2634, %v2635
  %v2637 = vrot.slane %v2599, 4
  %v2638 = vadd.f32 %v2599, %v2637
  %v2639 = vrot.slane %v2638, 2
  %v2640 = vadd.f32 %v2638, %v2639
  %v2641 = vrot.slane %v2640, 1
  %v2642 = vadd.f32 %v2640, %v2641
  %v2643 = vrot.slane %v2602, 4
  %v2644 = vadd.f32 %v2602, %v2643
  %v2645 = vrot.slane %v2644, 2
  %v2646 = vadd.f32 %v2644, %v2645
  %v2647 = vrot.slane %v2646, 1
  %v2648 = vadd.f32 %v2646, %v2647
  %v2649 = vrot.slane %v2607, 4
  %v2650 = vadd.f32 %v2607, %v2649
  %v2651 = vrot.slane %v2650, 2
  %v2652 = vadd.f32 %v2650, %v2651
  %v2653 = vrot.slane %v2652, 1
  %v2654 = vadd.f32 %v2652, %v2653
  %v2655 = vrot.slane %v2610, 4
  %v2656 = vadd.f32 %v2610, %v2655
  %v2657 = vrot.slane %v2656, 2
  %v2658 = vadd.f32 %v2656, %v2657
  %v2659 = vrot.slane %v2658, 1
  %v2660 = vadd.f32 %v2658, %v2659
  %v2661 = vadd.f32 %v1661, %v2618
  %v2662 = vadd.f32 %v1662, %v2624
  %v2663 = vadd.f32 %v1663, %v2630
  %v2664 = vadd.f32 %v1664, %v2636
  %v2665 = vadd.f32 %v1665, %v2642
  %v2666 = vadd.f32 %v1666, %v2648
  %v2667 = vadd.f32 %v1667, %v2654
  %v2668 = vadd.f32 %v1668, %v2660
  %v2669 = vld [vmem:[%s4] sm:$0x1]
  %v2671 = vlaneseq
  %v2672 = vshrl.u32 %v2671, 7
  %v2673 = vsub.s32 0, %v2672
  %v2674 = vrot.slane %v2669, %v2673
  %v2676 = vadd.f32 %v2661, %v2674
  %v2677 = vadd.f32 %v2662, %v2674
  %v2678 = vadd.f32 %v2663, %v2674
  %v2679 = vadd.f32 %v2664, %v2674
  %v2680 = vadd.f32 %v2665, %v2674
  %v2681 = vadd.f32 %v2666, %v2674
  %v2682 = vadd.f32 %v2667, %v2674
  %v2683 = vadd.f32 %v2668, %v2674
  %v2692 = vrot.slane %v2677, 7
  %vm2693 = vcmask 1041409
  %v2694 = vsel %vm2693, %v2692, %v2676
  %v2695 = vrot.slane %v2678, 6
  %vm2696 = vcmask 1042434
  %v2697 = vsel %vm2696, %v2695, %v2694
  %v2698 = vrot.slane %v2679, 5
  %vm2699 = vcmask 1043459
  %v2700 = vsel %vm2699, %v2698, %v2697
  %v2701 = vrot.slane %v2680, 4
  %vm2702 = vcmask 1044484
  %v2703 = vsel %vm2702, %v2701, %v2700
  %v2704 = vrot.slane %v2681, 3
  %vm2705 = vcmask 1045509
  %v2706 = vsel %vm2705, %v2704, %v2703
  %v2707 = vrot.slane %v2682, 2
  %vm2708 = vcmask 1046534
  %v2709 = vsel %vm2708, %v2707, %v2706
  %v2710 = vrot.slane %v2683, 1
  %vm2711 = vcmask 1047559
  %v2712 = vsel %vm2711, %v2710, %v2709
  %2714 = vst [vmem:[%s5] sm:$0xff] %v2712
  // Predicated region
  $region22: #{base_forward.1} parent=0 // pred_check
    _
  $region23: #{base_forward.1} parent=0 // pred_check_branch
    %2716 = sbr.rel (0) target = $region25
  $region24: #{base_forward.1} parent=0 // pred_region
    _
  $region25: #{base_forward.1} parent=0 // pred_fallthru
    _
  // Predicated region
  $region26: #{base_forward.1} parent=0 // pred_check
    _
  $region27: #{base_forward.1} parent=0 // pred_check_branch
    %2718 = sbr.rel (0) target = $region29
  $region28: #{base_forward.1} parent=0 // pred_region
    _
  $region29: #{base_forward.1} parent=0 // pred_fallthru
    _

</llo_original>
